<compile_context>
chip_gen: v5e
topology: v5e:2x2
jax: 0.10.0
libtpu: 0.0.40
codegen_flags: <defaults>
</compile_context>

<pallas_src>
import functools

import jax
import jax.numpy as jnp
from jax.experimental import pallas as pl
from jax.experimental.pallas import tpu as pltpu

# Set to jnp.bfloat16 to feed the MXU at native v6e/v7x throughput (accumulation and
# the scale/shift/relu epilogue stay in f32 either way).  float32 keeps full parity
# with the f32 PyTorch module, so it is the default here.
COMPUTE_DTYPE = jnp.float32

_LANES = 128


def _round_up(x, m):
    return (x + m - 1) // m * m


def _mxu_dot(a, w):
    """MXU matmul with f32 accumulation; optional bf16 operand cast."""
    if COMPUTE_DTYPE != jnp.float32:
        a = a.astype(COMPUTE_DTYPE)
        w = w.astype(COMPUTE_DTYPE)
    return jnp.dot(a, w, preferred_element_type=jnp.float32)


# ----------------------------------------------------------------------------
# Pallas kernels
# ----------------------------------------------------------------------------
def _gemm_bn_relu_kernel(a_ref, w_ref, s_ref, t_ref, o_ref, *, n_out):
    """One M-tile of relu((a @ w) * scale + shift); stores the first n_out lanes."""
    y = _mxu_dot(a_ref[...], w_ref[...]) * s_ref[...] + t_ref[...]
    y = jnp.maximum(y, 0.0)
    o_ref[...] = y[:, :n_out].astype(o_ref.dtype)


def _fc_chain_kernel(x_ref, w1_ref, s1_ref, t1_ref, w2_ref, s2_ref, t2_ref,
                     w3_ref, b3_ref, o_ref):
    """fc1+bn3+relu -> (dropout = identity in eval) -> fc2+bn4+relu -> fc3, fused.

    All weights are resident VMEM blocks; intermediates never leave VMEM/vregs.
    Padded lanes stay exactly zero (zero weight cols/rows and zero scale/shift).
    """
    h = jnp.maximum(_mxu_dot(x_ref[...], w1_ref[...]) * s1_ref[...] + t1_ref[...], 0.0)
    h = jnp.maximum(_mxu_dot(h, w2_ref[...]) * s2_ref[...] + t2_ref[...], 0.0)
    o_ref[...] = (_mxu_dot(h, w3_ref[...]) + b3_ref[...]).astype(o_ref.dtype)


# ----------------------------------------------------------------------------
# Pallas wrappers
# ----------------------------------------------------------------------------
def fused_conv_gemm(a, w_pad, s_pad, t_pad, *, n_out, tm):
    """a: (M, K) f32 patches; w_pad: (Kp, 128); s/t: (1, 128) -> (M, n_out) f32."""
    M, K = a.shape
    Kp, Np = w_pad.shape
    if K != Kp:                                    # zero-pad contraction dim (K -> 8k)
        a = jnp.pad(a, ((0, 0), (0, Kp - K)))
    tm = min(tm, _round_up(M, 8))
    Mp = _round_up(M, tm)
    if Mp != M:                                    # zero-pad rows to whole M-tiles
        a = jnp.pad(a, ((0, Mp - M), (0, 0)))

    out = pl.pallas_call(
        functools.partial(_gemm_bn_relu_kernel, n_out=n_out),
        out_shape=jax.ShapeDtypeStruct((Mp, n_out), jnp.float32),
        grid=(Mp // tm,),
        in_specs=[
            pl.BlockSpec((tm, Kp), lambda i: (i, 0)),    # pipelined activation tiles
            pl.BlockSpec((Kp, Np), lambda i: (0, 0)),    # resident weight
            pl.BlockSpec((1, Np), lambda i: (0, 0)),     # resident BN scale
            pl.BlockSpec((1, Np), lambda i: (0, 0)),     # resident BN shift
        ],
        out_specs=pl.BlockSpec((tm, n_out), lambda i: (i, 0)),
        compiler_params=pltpu.CompilerParams(dimension_semantics=("parallel",)),
    )(a, w_pad, s_pad, t_pad)
    return out[:M] if Mp != M else out


def fused_fc_chain(x, prep, *, tm=256):
    """x: (B, 256) f32 -> (B, 128) f32 lane-dense logits slab (cols 10..127 are 0)."""
    M, K = x.shape
    tm = min(tm, _round_up(M, 8))
    Mp = _round_up(M, tm)
    if Mp != M:
        x = jnp.pad(x, ((0, Mp - M), (0, 0)))
    n = _LANES

    out = pl.pallas_call(
        _fc_chain_kernel,
        out_shape=jax.ShapeDtypeStruct((Mp, n), jnp.float32),
        grid=(Mp // tm,),
        in_specs=[
            pl.BlockSpec((tm, K), lambda i: (i, 0)),
            pl.BlockSpec((K, n), lambda i: (0, 0)),   # fc1 weight (resident)
            pl.BlockSpec((1, n), lambda i: (0, 0)),   # bn3 scale
            pl.BlockSpec((1, n), lambda i: (0, 0)),   # bn3 shift
            pl.BlockSpec((n, n), lambda i: (0, 0)),   # fc2 weight
            pl.BlockSpec((1, n), lambda i: (0, 0)),   # bn4 scale
            pl.BlockSpec((1, n), lambda i: (0, 0)),   # bn4 shift
            pl.BlockSpec((n, n), lambda i: (0, 0)),   # fc3 weight
            pl.BlockSpec((1, n), lambda i: (0, 0)),   # fc3 bias
        ],
        out_specs=pl.BlockSpec((tm, n), lambda i: (i, 0)),
        compiler_params=pltpu.CompilerParams(dimension_semantics=("parallel",)),
    )(x, prep["fc1_w"], prep["fc1_s"], prep["fc1_t"],
      prep["fc2_w"], prep["fc2_s"], prep["fc2_t"],
      prep["fc3_w"], prep["fc3_b"])
    return out[:M]


# ----------------------------------------------------------------------------
# Plain-JAX glue
# ----------------------------------------------------------------------------
def im2col(x, k):
    """x: (B, H, W, C) NHWC 'valid' patches -> (B*Ho*Wo, k*k*C).

    Feature order is (kh, kw, c); prepare_params() permutes the conv weights to match.
    """
    B, H, W, C = x.shape
    Ho, Wo = H - k + 1, W - k + 1
    cols = [x[:, kh:kh + Ho, kw:kw + Wo, :] for kh in range(k) for kw in range(k)]
    return jnp.concatenate(cols, axis=-1).reshape(B * Ho * Wo, k * k * C)


def maxpool2x2(x):
    """(B, H, W, C) -> (B, H//2, W//2, C): 4-way max of strided slices (XLA-fused).

    Keeps channels in the lane dim; no (M, 4) slab, no extra kernel launch.
    """
    a = jnp.maximum(x[:, 0::2, 0::2, :], x[:, 0::2, 1::2, :])
    b = jnp.maximum(x[:, 1::2, 0::2, :], x[:, 1::2, 1::2, :])
    return jnp.maximum(a, b)


def prepare_params(p, eps=1e-5):
    """One-time (outside jit) weight prep: fold BatchNorm(eval) + bias into per-channel
    scale/shift, permute/transpose weights into GEMM layout, zero-pad K to a multiple
    of 8 and N to 128 lanes, and cast MXU operands to COMPUTE_DTYPE."""
    f32 = jnp.float32

    def fold(gamma, beta, mean, var, bias):
        s = (gamma / jnp.sqrt(var + eps)).astype(f32)
        t = ((bias - mean) * s + beta).astype(f32)
        return s, t

    def pad2(x, rows, cols):
        x = jnp.asarray(x, f32)
        return jnp.pad(x, ((0, rows - x.shape[0]), (0, cols - x.shape[1])))

    def conv_w(w):                      # (OC, IC, kh, kw) -> (kh*kw*IC, OC)
        oc, ic, kh, kw = w.shape
        return jnp.transpose(w, (2, 3, 1, 0)).reshape(kh * kw * ic, oc)

    def row(v):
        return jnp.asarray(v, f32).reshape(1, -1)

    prep = {}

    s, t = fold(p["bn1_g"], p["bn1_b"], p["bn1_m"], p["bn1_v"], p["conv1_b"])
    prep["c1_w"] = pad2(conv_w(p["conv1_w"]), 32, _LANES).astype(COMPUTE_DTYPE)
    prep["c1_s"] = pad2(row(s), 1, _LANES)
    prep["c1_t"] = pad2(row(t), 1, _LANES)

    s, t = fold(p["bn2_g"], p["bn2_b"], p["bn2_m"], p["bn2_v"], p["conv2_b"])
    prep["c2_w"] = pad2(conv_w(p["conv2_w"]), 160, _LANES).astype(COMPUTE_DTYPE)
    prep["c2_s"] = pad2(row(s), 1, _LANES)
    prep["c2_t"] = pad2(row(t), 1, _LANES)

    s, t = fold(p["bn3_g"], p["bn3_b"], p["bn3_m"], p["bn3_v"], p["fc1_b"])
    prep["fc1_w"] = pad2(jnp.asarray(p["fc1_w"], f32).T, 256, _LANES).astype(COMPUTE_DTYPE)
    prep["fc1_s"] = pad2(row(s), 1, _LANES)
    prep["fc1_t"] = pad2(row(t), 1, _LANES)

    s, t = fold(p["bn4_g"], p["bn4_b"], p["bn4_m"], p["bn4_v"], p["fc2_b"])
    prep["fc2_w"] = pad2(jnp.asarray(p["fc2_w"], f32).T, _LANES, _LANES).astype(COMPUTE_DTYPE)
    prep["fc2_s"] = pad2(row(s), 1, _LANES)
    prep["fc2_t"] = pad2(row(t), 1, _LANES)

    prep["fc3_w"] = pad2(jnp.asarray(p["fc3_w"], f32).T, _LANES, _LANES).astype(COMPUTE_DTYPE)
    prep["fc3_b"] = pad2(row(p["fc3_b"]), 1, _LANES)
    return prep


def net_forward(x, prep):
    """x: (B, 1, 28, 28) f32 NCHW -> logits (B, 10) f32 (eval mode)."""
    B = x.shape[0]
    x = jnp.transpose(x, (0, 2, 3, 1))                        # NHWC (B, 28, 28, 1)

    # conv1 + bn1 + relu (Pallas GEMM), then 2x2 maxpool
    h = fused_conv_gemm(im2col(x, 5), prep["c1_w"], prep["c1_s"], prep["c1_t"],
                        n_out=6, tm=512)                      # (B*576, 6)
    h = maxpool2x2(h.reshape(B, 24, 24, 6))                   # (B, 12, 12, 6)

    # conv2 + bn2 + relu (Pallas GEMM), then 2x2 maxpool
    h = fused_conv_gemm(im2col(h, 5), prep["c2_w"], prep["c2_s"], prep["c2_t"],
                        n_out=16, tm=256)                     # (B*64, 16)
    h = maxpool2x2(h.reshape(B, 8, 8, 16))                    # (B, 4, 4, 16)

    # flatten in PyTorch (C, H, W) order
    flat = jnp.transpose(h, (0, 3, 1, 2)).reshape(B, 16 * 4 * 4)

    # fc1+bn3+relu -> dropout(identity) -> fc2+bn4+relu -> fc3: one fused kernel
    logits = fused_fc_chain(flat, prep, tm=256)               # (B, 128), lane-dense
    return logits[:, :10]


# ----------------------------------------------------------------------------
# Pure-JAX reference (for a numerical sanity check) and parameter init
# ----------------------------------------------------------------------------
def reference_forward(x, p, eps=1e-5):
    hi = jax.lax.Precision.HIGHEST

    def bn(h, g, b, m, v):
        shape = (1, -1) + (1,) * (h.ndim - 2)
        inv = g.reshape(shape) / jnp.sqrt(v.reshape(shape) + eps)
        return (h - m.reshape(shape)) * inv + b.reshape(shape)

    def conv(h, w, b):
        y = jax.lax.conv_general_dilated(
            h, w, (1, 1), "VALID",
            dimension_numbers=("NCHW", "OIHW", "NCHW"), precision=hi)
        return y + b.reshape(1, -1, 1, 1)

    def pool(h):
        return jax.lax.reduce_window(h, -jnp.inf, jax.lax.max,
                                     (1, 1, 2, 2), (1, 1, 2, 2), "VALID")

    h = pool(jax.nn.relu(bn(conv(x, p["conv1_w"], p["conv1_b"]),
                            p["bn1_g"], p["bn1_b"], p["bn1_m"], p["bn1_v"])))
    h = pool(jax.nn.relu(bn(conv(h, p["conv2_w"], p["conv2_b"]),
                            p["bn2_g"], p["bn2_b"], p["bn2_m"], p["bn2_v"])))
    h = h.reshape(h.shape[0], -1)
    h = jax.nn.relu(bn(jnp.dot(h, p["fc1_w"].T, precision=hi) + p["fc1_b"],
                       p["bn3_g"], p["bn3_b"], p["bn3_m"], p["bn3_v"]))
    h = jax.nn.relu(bn(jnp.dot(h, p["fc2_w"].T, precision=hi) + p["fc2_b"],
                       p["bn4_g"], p["bn4_b"], p["bn4_m"], p["bn4_v"]))
    return jnp.dot(h, p["fc3_w"].T, precision=hi) + p["fc3_b"]


def init_params(key):
    f32 = jnp.float32
    ks = iter(jax.random.split(key, 32))

    def rnd(shape, scale=0.1):
        return (scale * jax.random.normal(next(ks), shape)).astype(f32)

    def bn(prefix, n):
        return {
            f"{prefix}_g": jnp.ones((n,), f32) + rnd((n,), 0.05),
            f"{prefix}_b": rnd((n,)),
            f"{prefix}_m": rnd((n,)),
            f"{prefix}_v": jnp.abs(rnd((n,))) + 1.0,
        }

    params = {
        "conv1_w": rnd((6, 1, 5, 5)), "conv1_b": rnd((6,)),
        "conv2_w": rnd((16, 6, 5, 5)), "conv2_b": rnd((16,)),
        "fc1_w": rnd((120, 256)), "fc1_b": rnd((120,)),
        "fc2_w": rnd((84, 120)), "fc2_b": rnd((84,)),
        "fc3_w": rnd((10, 84)), "fc3_b": rnd((10,)),
    }
    params.update(bn("bn1", 6))
    params.update(bn("bn2", 16))
    params.update(bn("bn3", 120))
    params.update(bn("bn4", 84))
    return params


if __name__ == "__main__":
    key = jax.random.PRNGKey(0)
    pkey, xkey = jax.random.split(key)
    params = init_params(pkey)
    # MNIST-style input: batch=2, 1 channel, 28x28 (required by fc1 = 16*4*4).
    x = jax.random.normal(xkey, (2, 1, 28, 28), dtype=jnp.float32)

    prep = prepare_params(params)     # hoisted: folded BN + padded/permuted weights
    logits = jax.jit(net_forward)(x, prep)
    logits = jax.block_until_ready(logits)
    assert logits.shape == (2, 10) and logits.dtype == jnp.float32

    # Numerical sanity check against a pure-XLA reference of the module (eval mode).
    ref = jax.block_until_ready(jax.jit(reference_forward)(x, params))
    max_err = float(jnp.max(jnp.abs(logits - ref)))
    assert max_err < 5e-2, f"mismatch vs reference: max_err={max_err}"

    print("KERNEL_OK")
</pallas_src>

<mosaic_0001>
module attributes {stable_mosaic.version = 11 : i64} {
  func.func @_gemm_bn_relu_kernel(%arg0: i32, %arg1: memref<512x32xf32, #tpu.memory_space<vmem>>, %arg2: memref<32x128xf32, #tpu.memory_space<vmem>>, %arg3: memref<1x128xf32, #tpu.memory_space<vmem>>, %arg4: memref<1x128xf32, #tpu.memory_space<vmem>>, %arg5: memref<512x6xf32, #tpu.memory_space<vmem>>) attributes {dimension_semantics = [#tpu.dimension_semantics<parallel>], iteration_bounds = array<i64: 3>, scalar_prefetch = 0 : i64, scratch_operands = 0 : i64, tpu.core_type = #tpu.core_type<tc>, window_params = [{transform_indices = @transform_0, window_bounds = array<i64: 512, 32>}, {pipeline_mode = #tpu.pipeline_mode<synchronous>, transform_indices = @transform_1, window_bounds = array<i64: 32, 128>}, {pipeline_mode = #tpu.pipeline_mode<synchronous>, transform_indices = @transform_2, window_bounds = array<i64: 1, 128>}, {pipeline_mode = #tpu.pipeline_mode<synchronous>, transform_indices = @transform_3, window_bounds = array<i64: 1, 128>}, {transform_indices = @transform_4, window_bounds = array<i64: 512, 6>}]} {
    %c0 = arith.constant 0 : index
    %c0_0 = arith.constant 0 : index
    %0 = vector.load %arg1[%c0, %c0_0] : memref<512x32xf32, #tpu.memory_space<vmem>>, vector<512x32xf32>
    %c0_1 = arith.constant 0 : index
    %c0_2 = arith.constant 0 : index
    %1 = vector.load %arg2[%c0_1, %c0_2] : memref<32x128xf32, #tpu.memory_space<vmem>>, vector<32x128xf32>
    %cst = arith.constant dense<0.000000e+00> : vector<512x128xf32>
    %2 = tpu.matmul %0, %1, %cst {dimension_numbers = #tpu.dot_dimension_numbers<[1], [0], [0], [1], [0, 0, 1, 1], [], []>} : vector<512x32xf32>, vector<32x128xf32>, vector<512x128xf32> -> vector<512x128xf32>
    %c0_3 = arith.constant 0 : index
    %c0_4 = arith.constant 0 : index
    %3 = vector.load %arg3[%c0_3, %c0_4] : memref<1x128xf32, #tpu.memory_space<vmem>>, vector<1x128xf32>
    %4 = vector.broadcast %3 : vector<1x128xf32> to vector<512x128xf32>
    %5 = arith.mulf %2, %4 : vector<512x128xf32>
    %c0_5 = arith.constant 0 : index
    %c0_6 = arith.constant 0 : index
    %6 = vector.load %arg4[%c0_5, %c0_6] : memref<1x128xf32, #tpu.memory_space<vmem>>, vector<1x128xf32>
    %7 = vector.broadcast %6 : vector<1x128xf32> to vector<512x128xf32>
    %8 = arith.addf %5, %7 : vector<512x128xf32>
    %cst_7 = arith.constant 0.000000e+00 : f32
    %9 = vector.broadcast %cst_7 : f32 to vector<512x128xf32>
    %10 = arith.maximumf %8, %9 : vector<512x128xf32>
    %11 = vector.extract_strided_slice %10 {offsets = [0, 0], sizes = [512, 6], strides = [1, 1]} : vector<512x128xf32> to vector<512x6xf32>
    %c0_8 = arith.constant 0 : index
    %c0_9 = arith.constant 0 : index
    %12 = vector.load %arg5[%c0_8, %c0_9] : memref<512x6xf32, #tpu.memory_space<vmem>>, vector<512x6xf32>
    tpu.vector_store %arg5[%c0_8, %c0_9], %11 {strides = array<i32>} : memref<512x6xf32, #tpu.memory_space<vmem>>, vector<512x6xf32>,
    return
  }
  func.func @transform_0(%arg0: i32) -> (i32, i32) {
    %c0_i32 = arith.constant 0 : i32
    %c0_i32_0 = arith.constant 0 : i32
    return %arg0, %c0_i32 : i32, i32
  }
  func.func @transform_1(%arg0: i32) -> (i32, i32) {
    %c0_i32 = arith.constant 0 : i32
    %c0_i32_0 = arith.constant 0 : i32
    %c0_i32_1 = arith.constant 0 : i32
    return %c0_i32, %c0_i32_0 : i32, i32
  }
  func.func @transform_2(%arg0: i32) -> (i32, i32) {
    %c0_i32 = arith.constant 0 : i32
    %c0_i32_0 = arith.constant 0 : i32
    %c0_i32_1 = arith.constant 0 : i32
    return %c0_i32, %c0_i32_0 : i32, i32
  }
  func.func @transform_3(%arg0: i32) -> (i32, i32) {
    %c0_i32 = arith.constant 0 : i32
    %c0_i32_0 = arith.constant 0 : i32
    %c0_i32_1 = arith.constant 0 : i32
    return %c0_i32, %c0_i32_0 : i32, i32
  }
  func.func @transform_4(%arg0: i32) -> (i32, i32) {
    %c0_i32 = arith.constant 0 : i32
    %c0_i32_0 = arith.constant 0 : i32
    return %arg0, %c0_i32 : i32, i32
  }
}

module attributes {stable_mosaic.version = 11 : i64} {
  func.func @_gemm_bn_relu_kernel(%arg0: i32, %arg1: memref<128x160xf32, #tpu.memory_space<vmem>>, %arg2: memref<160x128xf32, #tpu.memory_space<vmem>>, %arg3: memref<1x128xf32, #tpu.memory_space<vmem>>, %arg4: memref<1x128xf32, #tpu.memory_space<vmem>>, %arg5: memref<128x16xf32, #tpu.memory_space<vmem>>) attributes {dimension_semantics = [#tpu.dimension_semantics<parallel>], iteration_bounds = array<i64: 1>, scalar_prefetch = 0 : i64, scratch_operands = 0 : i64, tpu.core_type = #tpu.core_type<tc>, window_params = [{transform_indices = @transform_0, window_bounds = array<i64: 128, 160>}, {pipeline_mode = #tpu.pipeline_mode<synchronous>, transform_indices = @transform_1, window_bounds = array<i64: 160, 128>}, {pipeline_mode = #tpu.pipeline_mode<synchronous>, transform_indices = @transform_2, window_bounds = array<i64: 1, 128>}, {pipeline_mode = #tpu.pipeline_mode<synchronous>, transform_indices = @transform_3, window_bounds = array<i64: 1, 128>}, {transform_indices = @transform_4, window_bounds = array<i64: 128, 16>}]} {
    %c0 = arith.constant 0 : index
    %c0_0 = arith.constant 0 : index
    %0 = vector.load %arg1[%c0, %c0_0] : memref<128x160xf32, #tpu.memory_space<vmem>>, vector<128x160xf32>
    %c0_1 = arith.constant 0 : index
    %c0_2 = arith.constant 0 : index
    %1 = vector.load %arg2[%c0_1, %c0_2] : memref<160x128xf32, #tpu.memory_space<vmem>>, vector<160x128xf32>
    %cst = arith.constant dense<0.000000e+00> : vector<128x128xf32>
    %2 = tpu.matmul %0, %1, %cst {dimension_numbers = #tpu.dot_dimension_numbers<[1], [0], [0], [1], [0, 0, 1, 1], [], []>} : vector<128x160xf32>, vector<160x128xf32>, vector<128x128xf32> -> vector<128x128xf32>
    %c0_3 = arith.constant 0 : index
    %c0_4 = arith.constant 0 : index
    %3 = vector.load %arg3[%c0_3, %c0_4] : memref<1x128xf32, #tpu.memory_space<vmem>>, vector<1x128xf32>
    %4 = vector.broadcast %3 : vector<1x128xf32> to vector<128x128xf32>
    %5 = arith.mulf %2, %4 : vector<128x128xf32>
    %c0_5 = arith.constant 0 : index
    %c0_6 = arith.constant 0 : index
    %6 = vector.load %arg4[%c0_5, %c0_6] : memref<1x128xf32, #tpu.memory_space<vmem>>, vector<1x128xf32>
    %7 = vector.broadcast %6 : vector<1x128xf32> to vector<128x128xf32>
    %8 = arith.addf %5, %7 : vector<128x128xf32>
    %cst_7 = arith.constant 0.000000e+00 : f32
    %9 = vector.broadcast %cst_7 : f32 to vector<128x128xf32>
    %10 = arith.maximumf %8, %9 : vector<128x128xf32>
    %11 = vector.extract_strided_slice %10 {offsets = [0, 0], sizes = [128, 16], strides = [1, 1]} : vector<128x128xf32> to vector<128x16xf32>
    %c0_8 = arith.constant 0 : index
    %c0_9 = arith.constant 0 : index
    %12 = vector.load %arg5[%c0_8, %c0_9] : memref<128x16xf32, #tpu.memory_space<vmem>>, vector<128x16xf32>
    tpu.vector_store %arg5[%c0_8, %c0_9], %11 {strides = array<i32>} : memref<128x16xf32, #tpu.memory_space<vmem>>, vector<128x16xf32>,
    return
  }
  func.func @transform_0(%arg0: i32) -> (i32, i32) {
    %c0_i32 = arith.constant 0 : i32
    %c0_i32_0 = arith.constant 0 : i32
    return %arg0, %c0_i32 : i32, i32
  }
  func.func @transform_1(%arg0: i32) -> (i32, i32) {
    %c0_i32 = arith.constant 0 : i32
    %c0_i32_0 = arith.constant 0 : i32
    %c0_i32_1 = arith.constant 0 : i32
    return %c0_i32, %c0_i32_0 : i32, i32
  }
  func.func @transform_2(%arg0: i32) -> (i32, i32) {
    %c0_i32 = arith.constant 0 : i32
    %c0_i32_0 = arith.constant 0 : i32
    %c0_i32_1 = arith.constant 0 : i32
    return %c0_i32, %c0_i32_0 : i32, i32
  }
  func.func @transform_3(%arg0: i32) -> (i32, i32) {
    %c0_i32 = arith.constant 0 : i32
    %c0_i32_0 = arith.constant 0 : i32
    %c0_i32_1 = arith.constant 0 : i32
    return %c0_i32, %c0_i32_0 : i32, i32
  }
  func.func @transform_4(%arg0: i32) -> (i32, i32) {
    %c0_i32 = arith.constant 0 : i32
    %c0_i32_0 = arith.constant 0 : i32
    return %arg0, %c0_i32 : i32, i32
  }
}

module attributes {stable_mosaic.version = 11 : i64} {
  func.func @_fc_chain_kernel(%arg0: i32, %arg1: memref<8x256xf32, #tpu.memory_space<vmem>>, %arg2: memref<256x128xf32, #tpu.memory_space<vmem>>, %arg3: memref<1x128xf32, #tpu.memory_space<vmem>>, %arg4: memref<1x128xf32, #tpu.memory_space<vmem>>, %arg5: memref<128x128xf32, #tpu.memory_space<vmem>>, %arg6: memref<1x128xf32, #tpu.memory_space<vmem>>, %arg7: memref<1x128xf32, #tpu.memory_space<vmem>>, %arg8: memref<128x128xf32, #tpu.memory_space<vmem>>, %arg9: memref<1x128xf32, #tpu.memory_space<vmem>>, %arg10: memref<8x128xf32, #tpu.memory_space<vmem>>) attributes {dimension_semantics = [#tpu.dimension_semantics<parallel>], iteration_bounds = array<i64: 1>, scalar_prefetch = 0 : i64, scratch_operands = 0 : i64, tpu.core_type = #tpu.core_type<tc>, window_params = [{transform_indices = @transform_0, window_bounds = array<i64: 8, 256>}, {pipeline_mode = #tpu.pipeline_mode<synchronous>, transform_indices = @transform_1, window_bounds = array<i64: 256, 128>}, {pipeline_mode = #tpu.pipeline_mode<synchronous>, transform_indices = @transform_2, window_bounds = array<i64: 1, 128>}, {pipeline_mode = #tpu.pipeline_mode<synchronous>, transform_indices = @transform_3, window_bounds = array<i64: 1, 128>}, {pipeline_mode = #tpu.pipeline_mode<synchronous>, transform_indices = @transform_4, window_bounds = array<i64: 128, 128>}, {pipeline_mode = #tpu.pipeline_mode<synchronous>, transform_indices = @transform_5, window_bounds = array<i64: 1, 128>}, {pipeline_mode = #tpu.pipeline_mode<synchronous>, transform_indices = @transform_6, window_bounds = array<i64: 1, 128>}, {pipeline_mode = #tpu.pipeline_mode<synchronous>, transform_indices = @transform_7, window_bounds = array<i64: 128, 128>}, {pipeline_mode = #tpu.pipeline_mode<synchronous>, transform_indices = @transform_8, window_bounds = array<i64: 1, 128>}, {transform_indices = @transform_9, window_bounds = array<i64: 8, 128>}]} {
    %c0 = arith.constant 0 : index
    %c0_0 = arith.constant 0 : index
    %0 = vector.load %arg1[%c0, %c0_0] : memref<8x256xf32, #tpu.memory_space<vmem>>, vector<8x256xf32>
    %c0_1 = arith.constant 0 : index
    %c0_2 = arith.constant 0 : index
    %1 = vector.load %arg2[%c0_1, %c0_2] : memref<256x128xf32, #tpu.memory_space<vmem>>, vector<256x128xf32>
    %cst = arith.constant dense<0.000000e+00> : vector<8x128xf32>
    %2 = tpu.matmul %0, %1, %cst {dimension_numbers = #tpu.dot_dimension_numbers<[1], [0], [0], [1], [0, 0, 1, 1], [], []>} : vector<8x256xf32>, vector<256x128xf32>, vector<8x128xf32> -> vector<8x128xf32>
    %c0_3 = arith.constant 0 : index
    %c0_4 = arith.constant 0 : index
    %3 = vector.load %arg3[%c0_3, %c0_4] : memref<1x128xf32, #tpu.memory_space<vmem>>, vector<1x128xf32>
    %4 = vector.broadcast %3 : vector<1x128xf32> to vector<8x128xf32>
    %5 = arith.mulf %2, %4 : vector<8x128xf32>
    %c0_5 = arith.constant 0 : index
    %c0_6 = arith.constant 0 : index
    %6 = vector.load %arg4[%c0_5, %c0_6] : memref<1x128xf32, #tpu.memory_space<vmem>>, vector<1x128xf32>
    %7 = vector.broadcast %6 : vector<1x128xf32> to vector<8x128xf32>
    %8 = arith.addf %5, %7 : vector<8x128xf32>
    %cst_7 = arith.constant 0.000000e+00 : f32
    %9 = vector.broadcast %cst_7 : f32 to vector<8x128xf32>
    %10 = arith.maximumf %8, %9 : vector<8x128xf32>
    %c0_8 = arith.constant 0 : index
    %c0_9 = arith.constant 0 : index
    %11 = vector.load %arg5[%c0_8, %c0_9] : memref<128x128xf32, #tpu.memory_space<vmem>>, vector<128x128xf32>
    %cst_10 = arith.constant dense<0.000000e+00> : vector<8x128xf32>
    %12 = tpu.matmul %10, %11, %cst_10 {dimension_numbers = #tpu.dot_dimension_numbers<[1], [0], [0], [1], [0, 0, 1, 1], [], []>} : vector<8x128xf32>, vector<128x128xf32>, vector<8x128xf32> -> vector<8x128xf32>
    %c0_11 = arith.constant 0 : index
    %c0_12 = arith.constant 0 : index
    %13 = vector.load %arg6[%c0_11, %c0_12] : memref<1x128xf32, #tpu.memory_space<vmem>>, vector<1x128xf32>
    %14 = vector.broadcast %13 : vector<1x128xf32> to vector<8x128xf32>
    %15 = arith.mulf %12, %14 : vector<8x128xf32>
    %c0_13 = arith.constant 0 : index
    %c0_14 = arith.constant 0 : index
    %16 = vector.load %arg7[%c0_13, %c0_14] : memref<1x128xf32, #tpu.memory_space<vmem>>, vector<1x128xf32>
    %17 = vector.broadcast %16 : vector<1x128xf32> to vector<8x128xf32>
    %18 = arith.addf %15, %17 : vector<8x128xf32>
    %cst_15 = arith.constant 0.000000e+00 : f32
    %19 = vector.broadcast %cst_15 : f32 to vector<8x128xf32>
    %20 = arith.maximumf %18, %19 : vector<8x128xf32>
    %c0_16 = arith.constant 0 : index
    %c0_17 = arith.constant 0 : index
    %21 = vector.load %arg8[%c0_16, %c0_17] : memref<128x128xf32, #tpu.memory_space<vmem>>, vector<128x128xf32>
    %cst_18 = arith.constant dense<0.000000e+00> : vector<8x128xf32>
    %22 = tpu.matmul %20, %21, %cst_18 {dimension_numbers = #tpu.dot_dimension_numbers<[1], [0], [0], [1], [0, 0, 1, 1], [], []>} : vector<8x128xf32>, vector<128x128xf32>, vector<8x128xf32> -> vector<8x128xf32>
    %c0_19 = arith.constant 0 : index
    %c0_20 = arith.constant 0 : index
    %23 = vector.load %arg9[%c0_19, %c0_20] : memref<1x128xf32, #tpu.memory_space<vmem>>, vector<1x128xf32>
    %24 = vector.broadcast %23 : vector<1x128xf32> to vector<8x128xf32>
    %25 = arith.addf %22, %24 : vector<8x128xf32>
    %c0_21 = arith.constant 0 : index
    %c0_22 = arith.constant 0 : index
    %26 = vector.load %arg10[%c0_21, %c0_22] : memref<8x128xf32, #tpu.memory_space<vmem>>, vector<8x128xf32>
    tpu.vector_store %arg10[%c0_21, %c0_22], %25 {strides = array<i32>} : memref<8x128xf32, #tpu.memory_space<vmem>>, vector<8x128xf32>,
    return
  }
  func.func @transform_0(%arg0: i32) -> (i32, i32) {
    %c0_i32 = arith.constant 0 : i32
    %c0_i32_0 = arith.constant 0 : i32
    return %arg0, %c0_i32 : i32, i32
  }
  func.func @transform_1(%arg0: i32) -> (i32, i32) {
    %c0_i32 = arith.constant 0 : i32
    %c0_i32_0 = arith.constant 0 : i32
    %c0_i32_1 = arith.constant 0 : i32
    return %c0_i32, %c0_i32_0 : i32, i32
  }
  func.func @transform_2(%arg0: i32) -> (i32, i32) {
    %c0_i32 = arith.constant 0 : i32
    %c0_i32_0 = arith.constant 0 : i32
    %c0_i32_1 = arith.constant 0 : i32
    return %c0_i32, %c0_i32_0 : i32, i32
  }
  func.func @transform_3(%arg0: i32) -> (i32, i32) {
    %c0_i32 = arith.constant 0 : i32
    %c0_i32_0 = arith.constant 0 : i32
    %c0_i32_1 = arith.constant 0 : i32
    return %c0_i32, %c0_i32_0 : i32, i32
  }
  func.func @transform_4(%arg0: i32) -> (i32, i32) {
    %c0_i32 = arith.constant 0 : i32
    %c0_i32_0 = arith.constant 0 : i32
    %c0_i32_1 = arith.constant 0 : i32
    return %c0_i32, %c0_i32_0 : i32, i32
  }
  func.func @transform_5(%arg0: i32) -> (i32, i32) {
    %c0_i32 = arith.constant 0 : i32
    %c0_i32_0 = arith.constant 0 : i32
    %c0_i32_1 = arith.constant 0 : i32
    return %c0_i32, %c0_i32_0 : i32, i32
  }
  func.func @transform_6(%arg0: i32) -> (i32, i32) {
    %c0_i32 = arith.constant 0 : i32
    %c0_i32_0 = arith.constant 0 : i32
    %c0_i32_1 = arith.constant 0 : i32
    return %c0_i32, %c0_i32_0 : i32, i32
  }
  func.func @transform_7(%arg0: i32) -> (i32, i32) {
    %c0_i32 = arith.constant 0 : i32
    %c0_i32_0 = arith.constant 0 : i32
    %c0_i32_1 = arith.constant 0 : i32
    return %c0_i32, %c0_i32_0 : i32, i32
  }
  func.func @transform_8(%arg0: i32) -> (i32, i32) {
    %c0_i32 = arith.constant 0 : i32
    %c0_i32_0 = arith.constant 0 : i32
    %c0_i32_1 = arith.constant 0 : i32
    return %c0_i32, %c0_i32_0 : i32, i32
  }
  func.func @transform_9(%arg0: i32) -> (i32, i32) {
    %c0_i32 = arith.constant 0 : i32
    %c0_i32_0 = arith.constant 0 : i32
    return %arg0, %c0_i32 : i32, i32
  }
}

</mosaic_0001>

<llo_original>
// kernel: net_forward.3
$region0: #{net_forward.3}
  #allocation0 [shape = 'u32[]', space=smem, size = 0x4, offset = 0x4, fixed_abs, tag = 'smem constant byte address 0x4 - core index']
  #allocation1 [shape = 'u32[72,128]{1,0:T(1,128)}', space=vmem, size = 0x9000, scoped, tag = 'internal scratch']
  %s0 = inlined_call_operand.vmem [shape: f32[1536,32], index: 0, kind: input, shape index: {}]
  %s1 = inlined_call_operand.vmem [shape: f32[32,128], index: 1, kind: input, shape index: {}]
  %s2 = inlined_call_operand.vmem [shape: f32[1,128], index: 2, kind: input, shape index: {}]
  %s3 = inlined_call_operand.vmem [shape: f32[1,128], index: 3, kind: input, shape index: {}]
  %s4 = inlined_call_operand.vmem [shape: f32[1536,6], index: 4, kind: output, shape index: {}]
  %s5 = sld [smem:[#allocation0]]
  $region49: #{net_forward.3} parent=0
    _
  %s7 = ssub.s32 1, %s5
  %s8 = scalar_select 0, %s7, %s5
  loop: start=0, step=1, limit=5
  $region2: #{net_forward.3} parent=0 // loop_pre_header
    _
  $region3: #{net_forward.3} parent=0 // loop_header
    %s10 = sphi 0, %s14
    %p11 = scmp.ge.s32.totalorder %s10, 5
    %s20 = sphi 0, %s22
    %s23 = sphi 0, %s20
    %s24 = sphi 0, %s23
    %s40 = sphi 0, %s24
    %s44 = sphi 0, %s44
    %s46 = sphi 0, %s44
    %s47 = sphi 0, %s46
    %s61 = sphi 0, %s47
    %s65 = sphi 0, %s65
    %s67 = sphi 0, %s65
    %s68 = sphi 0, %s67
    %s82 = sphi 0, %s68
    %s86 = sphi 0, %s86
    %s88 = sphi 0, %s86
    %s89 = sphi 0, %s88
    %s103 = sphi 0, %s89
    %s109 = sphi 0, %s111
    %s112 = sphi 0, %s109
    %s113 = sphi 0, %s112
    %s129 = sphi 0, %s113
  $region4: #{net_forward.3} parent=0 // loop_header_branch
    %13 = sbr.rel (%p11) target = $region8
  $region5: #{net_forward.3} parent=0 // loop_body
    %s15 = ssub.s32 %s10, 1
    %s16 = ssub.s32 %s10, 2
    %s17 = sadd.s32 %s10, 1
    %s18 = ssub.s32 %s10, %s17
    %p19 = scmp.eq.s32.totalorder %s18, 0
    %s21 = sadd.s32 %s20, 1
    %s22 = scalar_select %p19, %s20, %s21
    %p25 = pneg %p19
    %p26 = scmp.eq.s32.totalorder %s10, 2
    %p27 = por %p25, %p26
    %p28 = scmp.ne.s32.totalorder %s20, %s23
    %p29 = scmp.eq.s32.totalorder %s10, 0
    %p30 = por %p28, %p29
    %p31 = scmp.ne.s32.totalorder %s20, %s23
    %p32 = scmp.eq.s32.totalorder %s15, 2
    %p33 = por %p31, %p32
    %p34 = scmp.ne.s32.totalorder %s23, %s24
    %p35 = scmp.eq.s32.totalorder %s15, 0
    %p36 = por %p34, %p35
    %p37 = scmp.ne.s32.totalorder %s23, %s24
    %p38 = scmp.eq.s32.totalorder %s16, 2
    %p39 = por %p37, %p38
    %p41 = scmp.ne.s32.totalorder %s24, %s40
    %p42 = scmp.eq.s32.totalorder %s16, 0
    %p43 = por %p41, %p42
    %s45 = sadd.s32 %s44, 1
    %p48 = scmp.eq.s32.totalorder %s10, 2
    %p49 = scmp.ne.s32.totalorder %s44, %s46
    %p50 = scmp.eq.s32.totalorder %s10, 0
    %p51 = por %p49, %p50
    %p52 = scmp.ne.s32.totalorder %s44, %s46
    %p53 = scmp.eq.s32.totalorder %s15, 2
    %p54 = por %p52, %p53
    %p55 = scmp.ne.s32.totalorder %s46, %s47
    %p56 = scmp.eq.s32.totalorder %s15, 0
    %p57 = por %p55, %p56
    %p58 = scmp.ne.s32.totalorder %s46, %s47
    %p59 = scmp.eq.s32.totalorder %s16, 2
    %p60 = por %p58, %p59
    %p62 = scmp.ne.s32.totalorder %s47, %s61
    %p63 = scmp.eq.s32.totalorder %s16, 0
    %p64 = por %p62, %p63
    %s66 = sadd.s32 %s65, 1
    %p69 = scmp.eq.s32.totalorder %s10, 2
    %p70 = scmp.ne.s32.totalorder %s65, %s67
    %p71 = scmp.eq.s32.totalorder %s10, 0
    %p72 = por %p70, %p71
    %p73 = scmp.ne.s32.totalorder %s65, %s67
    %p74 = scmp.eq.s32.totalorder %s15, 2
    %p75 = por %p73, %p74
    %p76 = scmp.ne.s32.totalorder %s67, %s68
    %p77 = scmp.eq.s32.totalorder %s15, 0
    %p78 = por %p76, %p77
    %p79 = scmp.ne.s32.totalorder %s67, %s68
    %p80 = scmp.eq.s32.totalorder %s16, 2
    %p81 = por %p79, %p80
    %p83 = scmp.ne.s32.totalorder %s68, %s82
    %p84 = scmp.eq.s32.totalorder %s16, 0
    %p85 = por %p83, %p84
    %s87 = sadd.s32 %s86, 1
    %p90 = scmp.eq.s32.totalorder %s10, 2
    %p91 = scmp.ne.s32.totalorder %s86, %s88
    %p92 = scmp.eq.s32.totalorder %s10, 0
    %p93 = por %p91, %p92
    %p94 = scmp.ne.s32.totalorder %s86, %s88
    %p95 = scmp.eq.s32.totalorder %s15, 2
    %p96 = por %p94, %p95
    %p97 = scmp.ne.s32.totalorder %s88, %s89
    %p98 = scmp.eq.s32.totalorder %s15, 0
    %p99 = por %p97, %p98
    %p100 = scmp.ne.s32.totalorder %s88, %s89
    %p101 = scmp.eq.s32.totalorder %s16, 2
    %p102 = por %p100, %p101
    %p104 = scmp.ne.s32.totalorder %s89, %s103
    %p105 = scmp.eq.s32.totalorder %s16, 0
    %p106 = por %p104, %p105
    %s107 = ssub.s32 %s10, %s17
    %p108 = scmp.eq.s32.totalorder %s107, 0
    %s110 = sadd.s32 %s109, 1
    %s111 = scalar_select %p108, %s109, %s110
    %p114 = pneg %p108
    %p115 = scmp.eq.s32.totalorder %s10, 2
    %p116 = por %p114, %p115
    %p117 = scmp.ne.s32.totalorder %s109, %s112
    %p118 = scmp.eq.s32.totalorder %s10, 0
    %p119 = por %p117, %p118
    %p120 = scmp.ne.s32.totalorder %s109, %s112
    %p121 = scmp.eq.s32.totalorder %s15, 2
    %p122 = por %p120, %p121
    %p123 = scmp.ne.s32.totalorder %s112, %s113
    %p124 = scmp.eq.s32.totalorder %s15, 0
    %p125 = por %p123, %p124
    %p126 = scmp.ne.s32.totalorder %s112, %s113
    %p127 = scmp.eq.s32.totalorder %s16, 2
    %p128 = por %p126, %p127
    %p130 = scmp.ne.s32.totalorder %s113, %s129
    %p131 = scmp.eq.s32.totalorder %s16, 0
    %p132 = por %p130, %p131
    %p133 = scmp.le.s32.totalorder 1, %s10
    %p134 = scmp.lt.s32.totalorder %s10, 4
    %p135 = pnand %p133, %p134
    %p136 = pneg %p135
    // Predicated region
    $region9: #{net_forward.3} parent=5 // pred_check
      _
    $region10: #{net_forward.3} parent=5 // pred_check_branch
      %138 = sbr.rel (%p135) target = $region12
    $region11: #{net_forward.3} parent=5 // pred_region
      %s139 = ssub.s32 %s10, 1
      // Predicated region
      $region13: #{net_forward.3} parent=11 // pred_check
        %p140 = pneg %p57
      $region14: #{net_forward.3} parent=11 // pred_check_branch
        %142 = sbr.rel (%p140) target = $region16
      $region15: #{net_forward.3} parent=11 // pred_region
        _
      $region16: #{net_forward.3} parent=11 // pred_fallthru
        _
      // Predicated region
      $region17: #{net_forward.3} parent=11 // pred_check
        %p143 = pneg %p78
      $region18: #{net_forward.3} parent=11 // pred_check_branch
        %145 = sbr.rel (%p143) target = $region20
      $region19: #{net_forward.3} parent=11 // pred_region
        _
      $region20: #{net_forward.3} parent=11 // pred_fallthru
        _
      // Predicated region
      $region21: #{net_forward.3} parent=11 // pred_check
        %p146 = pneg %p99
      $region22: #{net_forward.3} parent=11 // pred_check_branch
        %148 = sbr.rel (%p146) target = $region24
      $region23: #{net_forward.3} parent=11 // pred_region
        _
      $region24: #{net_forward.3} parent=11 // pred_fallthru
        _
    $region12: #{net_forward.3} parent=5 // pred_fallthru
      _
    %p149 = scmp.lt.s32.totalorder %s10, 3
    // Predicated region
    $region25: #{net_forward.3} parent=5 // pred_check
      %p150 = pneg %p149
    $region26: #{net_forward.3} parent=5 // pred_check_branch
      %152 = sbr.rel (%p150) target = $region28
    $region27: #{net_forward.3} parent=5 // pred_region
      // Predicated region
      $region29: #{net_forward.3} parent=27 // pred_check
        %p153 = pneg %p30
      $region30: #{net_forward.3} parent=27 // pred_check_branch
        %155 = sbr.rel (%p153) target = $region32
      $region31: #{net_forward.3} parent=27 // pred_region
        %s156 = smul.u32 64, %s10
        %p157 = scmp.lt.s32.totalorder %s156, 191
        %s158 = scalar_select %p157, %s156, 191
        %s159 = smul.addr %s158, 8
        %s160 = scalar_lea.vmem %s0, %s159
        %s161 = smul.u32 64, %s10
      $region32: #{net_forward.3} parent=27 // pred_fallthru
        _
    $region28: #{net_forward.3} parent=5 // pred_fallthru
      _
    %p162 = scmp.le.s32.totalorder 1, %s10
    %p163 = scmp.lt.s32.totalorder %s10, 4
    %p164 = pnand %p162, %p163
    %p165 = pneg %p164
    // Predicated region
    $region33: #{net_forward.3} parent=5 // pred_check
      _
    $region34: #{net_forward.3} parent=5 // pred_check_branch
      %167 = sbr.rel (%p164) target = $region36
    $region35: #{net_forward.3} parent=5 // pred_region
      %s168 = ssub.s32 %s10, 1
      %s169 = smul.u32 64, %s15
      %p170 = scmp.lt.s32.totalorder %s169, 191
      %s171 = scalar_select %p170, %s169, 191
      %s172 = smul.addr %s171, 8
      %s173 = scalar_lea.vmem %s0, %s172
      %p174 = pneg %p36
      %p175 = pneg %p33
      %p176 = pneg %p57
      %p177 = pneg %p54
      %p178 = pneg %p78
      %p179 = pneg %p75
      %p180 = pneg %p99
      %p181 = pneg %p96
      %p182 = pneg %p125
      %p183 = pneg %p122
      %s184 = smul.u32 64, %s15
      %p185 = scmp.lt.s32.totalorder %s184, 191
      %s186 = scalar_select %p185, %s184, 191
      %s187 = smul.addr %s186, 8
      %s188 = scalar_lea.vmem %s4, %s187
      %s189 = smul.u32 64, %s15
      %p190 = scmp.lt.s32.totalorder %s189, 191
      %s191 = scalar_select %p190, %s189, 191
      %s192 = smul.addr %s191, 8
      %s193 = scalar_lea.vmem %s0, %s192
      %s194 = smul.u32 64, %s15
      %s195 = smul.u32 64, %s15
      %p196 = scmp.lt.s32.totalorder %s195, 191
      %s197 = scalar_select %p196, %s195, 191
      %s198 = smul.addr %s197, 8
      %s199 = scalar_lea.vmem %s4, %s198
      %s200 = smul.u32 64, %s15
      %v201 = vld [vmem:[%s193] sm:$0xff]
      %v202 = vld [vmem:[%s193 + $0x8] sm:$0xff]
      %v203 = vld [vmem:[%s193 + $0x10] sm:$0xff]
      %v204 = vld [vmem:[%s193 + $0x18] sm:$0xff]
      %v205 = vld [vmem:[%s193 + $0x20] sm:$0xff]
      %v206 = vld [vmem:[%s193 + $0x28] sm:$0xff]
      %v207 = vld [vmem:[%s193 + $0x30] sm:$0xff]
      %v208 = vld [vmem:[%s193 + $0x38] sm:$0xff]
      %v209 = vld [vmem:[%s193 + $0x40] sm:$0xff]
      %v210 = vld [vmem:[%s193 + $0x48] sm:$0xff]
      %v211 = vld [vmem:[%s193 + $0x50] sm:$0xff]
      %v212 = vld [vmem:[%s193 + $0x58] sm:$0xff]
      %v213 = vld [vmem:[%s193 + $0x60] sm:$0xff]
      %v214 = vld [vmem:[%s193 + $0x68] sm:$0xff]
      %v215 = vld [vmem:[%s193 + $0x70] sm:$0xff]
      %v216 = vld [vmem:[%s193 + $0x78] sm:$0xff]
      %v217 = vld [vmem:[%s193 + $0x80] sm:$0xff]
      %v218 = vld [vmem:[%s193 + $0x88] sm:$0xff]
      %v219 = vld [vmem:[%s193 + $0x90] sm:$0xff]
      %v220 = vld [vmem:[%s193 + $0x98] sm:$0xff]
      %v221 = vld [vmem:[%s193 + $0xa0] sm:$0xff]
      %v222 = vld [vmem:[%s193 + $0xa8] sm:$0xff]
      %v223 = vld [vmem:[%s193 + $0xb0] sm:$0xff]
      %v224 = vld [vmem:[%s193 + $0xb8] sm:$0xff]
      %v225 = vld [vmem:[%s193 + $0xc0] sm:$0xff]
      %v226 = vld [vmem:[%s193 + $0xc8] sm:$0xff]
      %v227 = vld [vmem:[%s193 + $0xd0] sm:$0xff]
      %v228 = vld [vmem:[%s193 + $0xd8] sm:$0xff]
      %v229 = vld [vmem:[%s193 + $0xe0] sm:$0xff]
      %v230 = vld [vmem:[%s193 + $0xe8] sm:$0xff]
      %v231 = vld [vmem:[%s193 + $0xf0] sm:$0xff]
      %v232 = vld [vmem:[%s193 + $0xf8] sm:$0xff]
      %v233 = vld [vmem:[%s193 + $0x100] sm:$0xff]
      %v234 = vld [vmem:[%s193 + $0x108] sm:$0xff]
      %v235 = vld [vmem:[%s193 + $0x110] sm:$0xff]
      %v236 = vld [vmem:[%s193 + $0x118] sm:$0xff]
      %v237 = vld [vmem:[%s193 + $0x120] sm:$0xff]
      %v238 = vld [vmem:[%s193 + $0x128] sm:$0xff]
      %v239 = vld [vmem:[%s193 + $0x130] sm:$0xff]
      %v240 = vld [vmem:[%s193 + $0x138] sm:$0xff]
      %v241 = vld [vmem:[%s193 + $0x140] sm:$0xff]
      %v242 = vld [vmem:[%s193 + $0x148] sm:$0xff]
      %v243 = vld [vmem:[%s193 + $0x150] sm:$0xff]
      %v244 = vld [vmem:[%s193 + $0x158] sm:$0xff]
      %v245 = vld [vmem:[%s193 + $0x160] sm:$0xff]
      %v246 = vld [vmem:[%s193 + $0x168] sm:$0xff]
      %v247 = vld [vmem:[%s193 + $0x170] sm:$0xff]
      %v248 = vld [vmem:[%s193 + $0x178] sm:$0xff]
      %v249 = vld [vmem:[%s193 + $0x180] sm:$0xff]
      %v250 = vld [vmem:[%s193 + $0x188] sm:$0xff]
      %v251 = vld [vmem:[%s193 + $0x190] sm:$0xff]
      %v252 = vld [vmem:[%s193 + $0x198] sm:$0xff]
      %v253 = vld [vmem:[%s193 + $0x1a0] sm:$0xff]
      %v254 = vld [vmem:[%s193 + $0x1a8] sm:$0xff]
      %v255 = vld [vmem:[%s193 + $0x1b0] sm:$0xff]
      %v256 = vld [vmem:[%s193 + $0x1b8] sm:$0xff]
      %v257 = vld [vmem:[%s193 + $0x1c0] sm:$0xff]
      %v258 = vld [vmem:[%s193 + $0x1c8] sm:$0xff]
      %v259 = vld [vmem:[%s193 + $0x1d0] sm:$0xff]
      %v260 = vld [vmem:[%s193 + $0x1d8] sm:$0xff]
      %v261 = vld [vmem:[%s193 + $0x1e0] sm:$0xff]
      %v262 = vld [vmem:[%s193 + $0x1e8] sm:$0xff]
      %v263 = vld [vmem:[%s193 + $0x1f0] sm:$0xff]
      %v264 = vld [vmem:[%s193 + $0x1f8] sm:$0xff]
      %v265 = vld [vmem:[%s1] sm:$0xff]
      %v266 = vld [vmem:[%s1 + $0x8] sm:$0xff]
      %v267 = vld [vmem:[%s1 + $0x10] sm:$0xff]
      %v268 = vld [vmem:[%s1 + $0x18] sm:$0xff]
      %vm269 = vcmask 261120
      %v271 = vsel %vm269, %v201, 0
      %v274 = vsel %vm269, %v202, 0
      %v277 = vsel %vm269, %v203, 0
      %v280 = vsel %vm269, %v204, 0
      %v283 = vsel %vm269, %v205, 0
      %v286 = vsel %vm269, %v206, 0
      %v289 = vsel %vm269, %v207, 0
      %v292 = vsel %vm269, %v208, 0
      %v295 = vsel %vm269, %v209, 0
      %v298 = vsel %vm269, %v210, 0
      %v301 = vsel %vm269, %v211, 0
      %v304 = vsel %vm269, %v212, 0
      %v307 = vsel %vm269, %v213, 0
      %v310 = vsel %vm269, %v214, 0
      %v313 = vsel %vm269, %v215, 0
      %v316 = vsel %vm269, %v216, 0
      %v319 = vsel %vm269, %v217, 0
      %v322 = vsel %vm269, %v218, 0
      %v325 = vsel %vm269, %v219, 0
      %v328 = vsel %vm269, %v220, 0
      %v331 = vsel %vm269, %v221, 0
      %v334 = vsel %vm269, %v222, 0
      %v337 = vsel %vm269, %v223, 0
      %v340 = vsel %vm269, %v224, 0
      %v343 = vsel %vm269, %v225, 0
      %v346 = vsel %vm269, %v226, 0
      %v349 = vsel %vm269, %v227, 0
      %v352 = vsel %vm269, %v228, 0
      %v355 = vsel %vm269, %v229, 0
      %v358 = vsel %vm269, %v230, 0
      %v361 = vsel %vm269, %v231, 0
      %v364 = vsel %vm269, %v232, 0
      %v367 = vsel %vm269, %v233, 0
      %v370 = vsel %vm269, %v234, 0
      %v373 = vsel %vm269, %v235, 0
      %v376 = vsel %vm269, %v236, 0
      %v379 = vsel %vm269, %v237, 0
      %v382 = vsel %vm269, %v238, 0
      %v385 = vsel %vm269, %v239, 0
      %v388 = vsel %vm269, %v240, 0
      %v391 = vsel %vm269, %v241, 0
      %v394 = vsel %vm269, %v242, 0
      %v397 = vsel %vm269, %v243, 0
      %v400 = vsel %vm269, %v244, 0
      %v403 = vsel %vm269, %v245, 0
      %v406 = vsel %vm269, %v246, 0
      %v409 = vsel %vm269, %v247, 0
      %v412 = vsel %vm269, %v248, 0
      %v415 = vsel %vm269, %v249, 0
      %v418 = vsel %vm269, %v250, 0
      %v421 = vsel %vm269, %v251, 0
      %v424 = vsel %vm269, %v252, 0
      %v427 = vsel %vm269, %v253, 0
      %v430 = vsel %vm269, %v254, 0
      %v433 = vsel %vm269, %v255, 0
      %v436 = vsel %vm269, %v256, 0
      %v439 = vsel %vm269, %v257, 0
      %v442 = vsel %vm269, %v258, 0
      %v445 = vsel %vm269, %v259, 0
      %v448 = vsel %vm269, %v260, 0
      %v451 = vsel %vm269, %v261, 0
      %v454 = vsel %vm269, %v262, 0
      %v457 = vsel %vm269, %v263, 0
      %v460 = vsel %vm269, %v264, 0
      %462 = vmatpush.msra.mxu0 0.0
      %463 = vmatpush.msra.mxu0 0.0
      %464 = vmatpush.msra.mxu0 0.0
      %465 = vmatpush.msra.mxu0 0.0
      %466 = vmatpush.msra.mxu0 0.0
      %467 = vmatpush.msra.mxu0 0.0
      %468 = vmatpush.msra.mxu0 0.0
      %469 = vmatpush.msra.mxu0 0.0
      %470 = vmatpush.msra.mxu0 0.0
      %471 = vmatpush.msra.mxu0 0.0
      %472 = vmatpush.msra.mxu0 0.0
      %473 = vmatpush.msra.mxu0 0.0
      %474 = vmatpush.msra.mxu0 %v268
      %475 = vmatpush.msra.mxu0 %v267
      %476 = vmatpush.msra.mxu0 %v266
      %477 = vmatpush.msra.mxu0 %v265
      %478 = vmatmul.f32.gmra.mxu0 %v271
      %v479 = vpop.f32.mrf.mxu0
      %v480 = vadd.f32 0.0, %v479
      %481 = vmatmul.f32.gmra.mxu0 %v274
      %v482 = vpop.f32.mrf.mxu0
      %v483 = vadd.f32 0.0, %v482
      %484 = vmatmul.f32.gmra.mxu0 %v277
      %v485 = vpop.f32.mrf.mxu0
      %v486 = vadd.f32 0.0, %v485
      %487 = vmatmul.f32.gmra.mxu0 %v280
      %v488 = vpop.f32.mrf.mxu0
      %v489 = vadd.f32 0.0, %v488
      %490 = vmatmul.f32.gmra.mxu0 %v283
      %v491 = vpop.f32.mrf.mxu0
      %v492 = vadd.f32 0.0, %v491
      %493 = vmatmul.f32.gmra.mxu0 %v286
      %v494 = vpop.f32.mrf.mxu0
      %v495 = vadd.f32 0.0, %v494
      %496 = vmatmul.f32.gmra.mxu0 %v289
      %v497 = vpop.f32.mrf.mxu0
      %v498 = vadd.f32 0.0, %v497
      %499 = vmatmul.f32.gmra.mxu0 %v292
      %v500 = vpop.f32.mrf.mxu0
      %v501 = vadd.f32 0.0, %v500
      %502 = vmatmul.f32.gmra.mxu0 %v295
      %v503 = vpop.f32.mrf.mxu0
      %v504 = vadd.f32 0.0, %v503
      %505 = vmatmul.f32.gmra.mxu0 %v298
      %v506 = vpop.f32.mrf.mxu0
      %v507 = vadd.f32 0.0, %v506
      %508 = vmatmul.f32.gmra.mxu0 %v301
      %v509 = vpop.f32.mrf.mxu0
      %v510 = vadd.f32 0.0, %v509
      %511 = vmatmul.f32.gmra.mxu0 %v304
      %v512 = vpop.f32.mrf.mxu0
      %v513 = vadd.f32 0.0, %v512
      %514 = vmatmul.f32.gmra.mxu0 %v307
      %v515 = vpop.f32.mrf.mxu0
      %v516 = vadd.f32 0.0, %v515
      %517 = vmatmul.f32.gmra.mxu0 %v310
      %v518 = vpop.f32.mrf.mxu0
      %v519 = vadd.f32 0.0, %v518
      %520 = vmatmul.f32.gmra.mxu0 %v313
      %v521 = vpop.f32.mrf.mxu0
      %v522 = vadd.f32 0.0, %v521
      %523 = vmatmul.f32.gmra.mxu0 %v316
      %v524 = vpop.f32.mrf.mxu0
      %v525 = vadd.f32 0.0, %v524
      %526 = vmatmul.f32.gmra.mxu0 %v319
      %v527 = vpop.f32.mrf.mxu0
      %v528 = vadd.f32 0.0, %v527
      %529 = vmatmul.f32.gmra.mxu0 %v322
      %v530 = vpop.f32.mrf.mxu0
      %v531 = vadd.f32 0.0, %v530
      %532 = vmatmul.f32.gmra.mxu0 %v325
      %v533 = vpop.f32.mrf.mxu0
      %v534 = vadd.f32 0.0, %v533
      %535 = vmatmul.f32.gmra.mxu0 %v328
      %v536 = vpop.f32.mrf.mxu0
      %v537 = vadd.f32 0.0, %v536
      %538 = vmatmul.f32.gmra.mxu0 %v331
      %v539 = vpop.f32.mrf.mxu0
      %v540 = vadd.f32 0.0, %v539
      %541 = vmatmul.f32.gmra.mxu0 %v334
      %v542 = vpop.f32.mrf.mxu0
      %v543 = vadd.f32 0.0, %v542
      %544 = vmatmul.f32.gmra.mxu0 %v337
      %v545 = vpop.f32.mrf.mxu0
      %v546 = vadd.f32 0.0, %v545
      %547 = vmatmul.f32.gmra.mxu0 %v340
      %v548 = vpop.f32.mrf.mxu0
      %v549 = vadd.f32 0.0, %v548
      %550 = vmatmul.f32.gmra.mxu0 %v343
      %v551 = vpop.f32.mrf.mxu0
      %v552 = vadd.f32 0.0, %v551
      %553 = vmatmul.f32.gmra.mxu0 %v346
      %v554 = vpop.f32.mrf.mxu0
      %v555 = vadd.f32 0.0, %v554
      %556 = vmatmul.f32.gmra.mxu0 %v349
      %v557 = vpop.f32.mrf.mxu0
      %v558 = vadd.f32 0.0, %v557
      %559 = vmatmul.f32.gmra.mxu0 %v352
      %v560 = vpop.f32.mrf.mxu0
      %v561 = vadd.f32 0.0, %v560
      %562 = vmatmul.f32.gmra.mxu0 %v355
      %v563 = vpop.f32.mrf.mxu0
      %v564 = vadd.f32 0.0, %v563
      %565 = vmatmul.f32.gmra.mxu0 %v358
      %v566 = vpop.f32.mrf.mxu0
      %v567 = vadd.f32 0.0, %v566
      %568 = vmatmul.f32.gmra.mxu0 %v361
      %v569 = vpop.f32.mrf.mxu0
      %v570 = vadd.f32 0.0, %v569
      %571 = vmatmul.f32.gmra.mxu0 %v364
      %v572 = vpop.f32.mrf.mxu0
      %v573 = vadd.f32 0.0, %v572
      %574 = vmatmul.f32.gmra.mxu0 %v367
      %v575 = vpop.f32.mrf.mxu0
      %v576 = vadd.f32 0.0, %v575
      %577 = vmatmul.f32.gmra.mxu0 %v370
      %v578 = vpop.f32.mrf.mxu0
      %v579 = vadd.f32 0.0, %v578
      %580 = vmatmul.f32.gmra.mxu0 %v373
      %v581 = vpop.f32.mrf.mxu0
      %v582 = vadd.f32 0.0, %v581
      %583 = vmatmul.f32.gmra.mxu0 %v376
      %v584 = vpop.f32.mrf.mxu0
      %v585 = vadd.f32 0.0, %v584
      %586 = vmatmul.f32.gmra.mxu0 %v379
      %v587 = vpop.f32.mrf.mxu0
      %v588 = vadd.f32 0.0, %v587
      %589 = vmatmul.f32.gmra.mxu0 %v382
      %v590 = vpop.f32.mrf.mxu0
      %v591 = vadd.f32 0.0, %v590
      %592 = vmatmul.f32.gmra.mxu0 %v385
      %v593 = vpop.f32.mrf.mxu0
      %v594 = vadd.f32 0.0, %v593
      %595 = vmatmul.f32.gmra.mxu0 %v388
      %v596 = vpop.f32.mrf.mxu0
      %v597 = vadd.f32 0.0, %v596
      %598 = vmatmul.f32.gmra.mxu0 %v391
      %v599 = vpop.f32.mrf.mxu0
      %v600 = vadd.f32 0.0, %v599
      %601 = vmatmul.f32.gmra.mxu0 %v394
      %v602 = vpop.f32.mrf.mxu0
      %v603 = vadd.f32 0.0, %v602
      %604 = vmatmul.f32.gmra.mxu0 %v397
      %v605 = vpop.f32.mrf.mxu0
      %v606 = vadd.f32 0.0, %v605
      %607 = vmatmul.f32.gmra.mxu0 %v400
      %v608 = vpop.f32.mrf.mxu0
      %v609 = vadd.f32 0.0, %v608
      %610 = vmatmul.f32.gmra.mxu0 %v403
      %v611 = vpop.f32.mrf.mxu0
      %v612 = vadd.f32 0.0, %v611
      %613 = vmatmul.f32.gmra.mxu0 %v406
      %v614 = vpop.f32.mrf.mxu0
      %v615 = vadd.f32 0.0, %v614
      %616 = vmatmul.f32.gmra.mxu0 %v409
      %v617 = vpop.f32.mrf.mxu0
      %v618 = vadd.f32 0.0, %v617
      %619 = vmatmul.f32.gmra.mxu0 %v412
      %v620 = vpop.f32.mrf.mxu0
      %v621 = vadd.f32 0.0, %v620
      %622 = vmatmul.f32.gmra.mxu0 %v415
      %v623 = vpop.f32.mrf.mxu0
      %v624 = vadd.f32 0.0, %v623
      %625 = vmatmul.f32.gmra.mxu0 %v418
      %v626 = vpop.f32.mrf.mxu0
      %v627 = vadd.f32 0.0, %v626
      %628 = vmatmul.f32.gmra.mxu0 %v421
      %v629 = vpop.f32.mrf.mxu0
      %v630 = vadd.f32 0.0, %v629
      %631 = vmatmul.f32.gmra.mxu0 %v424
      %v632 = vpop.f32.mrf.mxu0
      %v633 = vadd.f32 0.0, %v632
      %634 = vmatmul.f32.gmra.mxu0 %v427
      %v635 = vpop.f32.mrf.mxu0
      %v636 = vadd.f32 0.0, %v635
      %637 = vmatmul.f32.gmra.mxu0 %v430
      %v638 = vpop.f32.mrf.mxu0
      %v639 = vadd.f32 0.0, %v638
      %640 = vmatmul.f32.gmra.mxu0 %v433
      %v641 = vpop.f32.mrf.mxu0
      %v642 = vadd.f32 0.0, %v641
      %643 = vmatmul.f32.gmra.mxu0 %v436
      %v644 = vpop.f32.mrf.mxu0
      %v645 = vadd.f32 0.0, %v644
      %646 = vmatmul.f32.gmra.mxu0 %v439
      %v647 = vpop.f32.mrf.mxu0
      %v648 = vadd.f32 0.0, %v647
      %649 = vmatmul.f32.gmra.mxu0 %v442
      %v650 = vpop.f32.mrf.mxu0
      %v651 = vadd.f32 0.0, %v650
      %652 = vmatmul.f32.gmra.mxu0 %v445
      %v653 = vpop.f32.mrf.mxu0
      %v654 = vadd.f32 0.0, %v653
      %655 = vmatmul.f32.gmra.mxu0 %v448
      %v656 = vpop.f32.mrf.mxu0
      %v657 = vadd.f32 0.0, %v656
      %658 = vmatmul.f32.gmra.mxu0 %v451
      %v659 = vpop.f32.mrf.mxu0
      %v660 = vadd.f32 0.0, %v659
      %661 = vmatmul.f32.gmra.mxu0 %v454
      %v662 = vpop.f32.mrf.mxu0
      %v663 = vadd.f32 0.0, %v662
      %664 = vmatmul.f32.gmra.mxu0 %v457
      %v665 = vpop.f32.mrf.mxu0
      %v666 = vadd.f32 0.0, %v665
      %667 = vmatmul.f32.gmra.mxu0 %v460
      %v668 = vpop.f32.mrf.mxu0
      %v669 = vadd.f32 0.0, %v668
      %670 = vdwg.mxu0
      %v671 = vld [vmem:[%s2] sm:$0x1]
      %v673 = vperm.slane %v671, 0
      %v675 = vmul.f32 %v480, %v673
      %v676 = vmul.f32 %v483, %v673
      %v677 = vmul.f32 %v486, %v673
      %v678 = vmul.f32 %v489, %v673
      %v679 = vmul.f32 %v492, %v673
      %v680 = vmul.f32 %v495, %v673
      %v681 = vmul.f32 %v498, %v673
      %v682 = vmul.f32 %v501, %v673
      %v683 = vmul.f32 %v504, %v673
      %v684 = vmul.f32 %v507, %v673
      %v685 = vmul.f32 %v510, %v673
      %v686 = vmul.f32 %v513, %v673
      %v687 = vmul.f32 %v516, %v673
      %v688 = vmul.f32 %v519, %v673
      %v689 = vmul.f32 %v522, %v673
      %v690 = vmul.f32 %v525, %v673
      %v691 = vmul.f32 %v528, %v673
      %v692 = vmul.f32 %v531, %v673
      %v693 = vmul.f32 %v534, %v673
      %v694 = vmul.f32 %v537, %v673
      %v695 = vmul.f32 %v540, %v673
      %v696 = vmul.f32 %v543, %v673
      %v697 = vmul.f32 %v546, %v673
      %v698 = vmul.f32 %v549, %v673
      %v699 = vmul.f32 %v552, %v673
      %v700 = vmul.f32 %v555, %v673
      %v701 = vmul.f32 %v558, %v673
      %v702 = vmul.f32 %v561, %v673
      %v703 = vmul.f32 %v564, %v673
      %v704 = vmul.f32 %v567, %v673
      %v705 = vmul.f32 %v570, %v673
      %v706 = vmul.f32 %v573, %v673
      %v707 = vmul.f32 %v576, %v673
      %v708 = vmul.f32 %v579, %v673
      %v709 = vmul.f32 %v582, %v673
      %v710 = vmul.f32 %v585, %v673
      %v711 = vmul.f32 %v588, %v673
      %v712 = vmul.f32 %v591, %v673
      %v713 = vmul.f32 %v594, %v673
      %v714 = vmul.f32 %v597, %v673
      %v715 = vmul.f32 %v600, %v673
      %v716 = vmul.f32 %v603, %v673
      %v717 = vmul.f32 %v606, %v673
      %v718 = vmul.f32 %v609, %v673
      %v719 = vmul.f32 %v612, %v673
      %v720 = vmul.f32 %v615, %v673
      %v721 = vmul.f32 %v618, %v673
      %v722 = vmul.f32 %v621, %v673
      %v723 = vmul.f32 %v624, %v673
      %v724 = vmul.f32 %v627, %v673
      %v725 = vmul.f32 %v630, %v673
      %v726 = vmul.f32 %v633, %v673
      %v727 = vmul.f32 %v636, %v673
      %v728 = vmul.f32 %v639, %v673
      %v729 = vmul.f32 %v642, %v673
      %v730 = vmul.f32 %v645, %v673
      %v731 = vmul.f32 %v648, %v673
      %v732 = vmul.f32 %v651, %v673
      %v733 = vmul.f32 %v654, %v673
      %v734 = vmul.f32 %v657, %v673
      %v735 = vmul.f32 %v660, %v673
      %v736 = vmul.f32 %v663, %v673
      %v737 = vmul.f32 %v666, %v673
      %v738 = vmul.f32 %v669, %v673
      %v739 = vld [vmem:[%s3] sm:$0x1]
      %v741 = vperm.slane %v739, 0
      %v743 = vadd.f32 %v675, %v741
      %v744 = vadd.f32 %v676, %v741
      %v745 = vadd.f32 %v677, %v741
      %v746 = vadd.f32 %v678, %v741
      %v747 = vadd.f32 %v679, %v741
      %v748 = vadd.f32 %v680, %v741
      %v749 = vadd.f32 %v681, %v741
      %v750 = vadd.f32 %v682, %v741
      %v751 = vadd.f32 %v683, %v741
      %v752 = vadd.f32 %v684, %v741
      %v753 = vadd.f32 %v685, %v741
      %v754 = vadd.f32 %v686, %v741
      %v755 = vadd.f32 %v687, %v741
      %v756 = vadd.f32 %v688, %v741
      %v757 = vadd.f32 %v689, %v741
      %v758 = vadd.f32 %v690, %v741
      %v759 = vadd.f32 %v691, %v741
      %v760 = vadd.f32 %v692, %v741
      %v761 = vadd.f32 %v693, %v741
      %v762 = vadd.f32 %v694, %v741
      %v763 = vadd.f32 %v695, %v741
      %v764 = vadd.f32 %v696, %v741
      %v765 = vadd.f32 %v697, %v741
      %v766 = vadd.f32 %v698, %v741
      %v767 = vadd.f32 %v699, %v741
      %v768 = vadd.f32 %v700, %v741
      %v769 = vadd.f32 %v701, %v741
      %v770 = vadd.f32 %v702, %v741
      %v771 = vadd.f32 %v703, %v741
      %v772 = vadd.f32 %v704, %v741
      %v773 = vadd.f32 %v705, %v741
      %v774 = vadd.f32 %v706, %v741
      %v775 = vadd.f32 %v707, %v741
      %v776 = vadd.f32 %v708, %v741
      %v777 = vadd.f32 %v709, %v741
      %v778 = vadd.f32 %v710, %v741
      %v779 = vadd.f32 %v711, %v741
      %v780 = vadd.f32 %v712, %v741
      %v781 = vadd.f32 %v713, %v741
      %v782 = vadd.f32 %v714, %v741
      %v783 = vadd.f32 %v715, %v741
      %v784 = vadd.f32 %v716, %v741
      %v785 = vadd.f32 %v717, %v741
      %v786 = vadd.f32 %v718, %v741
      %v787 = vadd.f32 %v719, %v741
      %v788 = vadd.f32 %v720, %v741
      %v789 = vadd.f32 %v721, %v741
      %v790 = vadd.f32 %v722, %v741
      %v791 = vadd.f32 %v723, %v741
      %v792 = vadd.f32 %v724, %v741
      %v793 = vadd.f32 %v725, %v741
      %v794 = vadd.f32 %v726, %v741
      %v795 = vadd.f32 %v727, %v741
      %v796 = vadd.f32 %v728, %v741
      %v797 = vadd.f32 %v729, %v741
      %v798 = vadd.f32 %v730, %v741
      %v799 = vadd.f32 %v731, %v741
      %v800 = vadd.f32 %v732, %v741
      %v801 = vadd.f32 %v733, %v741
      %v802 = vadd.f32 %v734, %v741
      %v803 = vadd.f32 %v735, %v741
      %v804 = vadd.f32 %v736, %v741
      %v805 = vadd.f32 %v737, %v741
      %v806 = vadd.f32 %v738, %v741
      %v807 = vmax.f32 %v743, 0.0
      %v808 = vmax.f32 %v744, 0.0
      %v809 = vmax.f32 %v745, 0.0
      %v810 = vmax.f32 %v746, 0.0
      %v811 = vmax.f32 %v747, 0.0
      %v812 = vmax.f32 %v748, 0.0
      %v813 = vmax.f32 %v749, 0.0
      %v814 = vmax.f32 %v750, 0.0
      %v815 = vmax.f32 %v751, 0.0
      %v816 = vmax.f32 %v752, 0.0
      %v817 = vmax.f32 %v753, 0.0
      %v818 = vmax.f32 %v754, 0.0
      %v819 = vmax.f32 %v755, 0.0
      %v820 = vmax.f32 %v756, 0.0
      %v821 = vmax.f32 %v757, 0.0
      %v822 = vmax.f32 %v758, 0.0
      %v823 = vmax.f32 %v759, 0.0
      %v824 = vmax.f32 %v760, 0.0
      %v825 = vmax.f32 %v761, 0.0
      %v826 = vmax.f32 %v762, 0.0
      %v827 = vmax.f32 %v763, 0.0
      %v828 = vmax.f32 %v764, 0.0
      %v829 = vmax.f32 %v765, 0.0
      %v830 = vmax.f32 %v766, 0.0
      %v831 = vmax.f32 %v767, 0.0
      %v832 = vmax.f32 %v768, 0.0
      %v833 = vmax.f32 %v769, 0.0
      %v834 = vmax.f32 %v770, 0.0
      %v835 = vmax.f32 %v771, 0.0
      %v836 = vmax.f32 %v772, 0.0
      %v837 = vmax.f32 %v773, 0.0
      %v838 = vmax.f32 %v774, 0.0
      %v839 = vmax.f32 %v775, 0.0
      %v840 = vmax.f32 %v776, 0.0
      %v841 = vmax.f32 %v777, 0.0
      %v842 = vmax.f32 %v778, 0.0
      %v843 = vmax.f32 %v779, 0.0
      %v844 = vmax.f32 %v780, 0.0
      %v845 = vmax.f32 %v781, 0.0
      %v846 = vmax.f32 %v782, 0.0
      %v847 = vmax.f32 %v783, 0.0
      %v848 = vmax.f32 %v784, 0.0
      %v849 = vmax.f32 %v785, 0.0
      %v850 = vmax.f32 %v786, 0.0
      %v851 = vmax.f32 %v787, 0.0
      %v852 = vmax.f32 %v788, 0.0
      %v853 = vmax.f32 %v789, 0.0
      %v854 = vmax.f32 %v790, 0.0
      %v855 = vmax.f32 %v791, 0.0
      %v856 = vmax.f32 %v792, 0.0
      %v857 = vmax.f32 %v793, 0.0
      %v858 = vmax.f32 %v794, 0.0
      %v859 = vmax.f32 %v795, 0.0
      %v860 = vmax.f32 %v796, 0.0
      %v861 = vmax.f32 %v797, 0.0
      %v862 = vmax.f32 %v798, 0.0
      %v863 = vmax.f32 %v799, 0.0
      %v864 = vmax.f32 %v800, 0.0
      %v865 = vmax.f32 %v801, 0.0
      %v866 = vmax.f32 %v802, 0.0
      %v867 = vmax.f32 %v803, 0.0
      %v868 = vmax.f32 %v804, 0.0
      %v869 = vmax.f32 %v805, 0.0
      %v870 = vmax.f32 %v806, 0.0
      %vm871 = vcmask 48128
      %872 = vst.msk [vmem:[%s199] sm:$0xff] %vm871, %v807
      %873 = vst.msk [vmem:[%s199 + $0x8] sm:$0xff] %vm871, %v808
      %874 = vst.msk [vmem:[%s199 + $0x10] sm:$0xff] %vm871, %v809
      %875 = vst.msk [vmem:[%s199 + $0x18] sm:$0xff] %vm871, %v810
      %876 = vst.msk [vmem:[%s199 + $0x20] sm:$0xff] %vm871, %v811
      %877 = vst.msk [vmem:[%s199 + $0x28] sm:$0xff] %vm871, %v812
      %878 = vst.msk [vmem:[%s199 + $0x30] sm:$0xff] %vm871, %v813
      %879 = vst.msk [vmem:[%s199 + $0x38] sm:$0xff] %vm871, %v814
      %880 = vst.msk [vmem:[%s199 + $0x40] sm:$0xff] %vm871, %v815
      %881 = vst.msk [vmem:[%s199 + $0x48] sm:$0xff] %vm871, %v816
      %882 = vst.msk [vmem:[%s199 + $0x50] sm:$0xff] %vm871, %v817
      %883 = vst.msk [vmem:[%s199 + $0x58] sm:$0xff] %vm871, %v818
      %884 = vst.msk [vmem:[%s199 + $0x60] sm:$0xff] %vm871, %v819
      %885 = vst.msk [vmem:[%s199 + $0x68] sm:$0xff] %vm871, %v820
      %886 = vst.msk [vmem:[%s199 + $0x70] sm:$0xff] %vm871, %v821
      %887 = vst.msk [vmem:[%s199 + $0x78] sm:$0xff] %vm871, %v822
      %888 = vst.msk [vmem:[%s199 + $0x80] sm:$0xff] %vm871, %v823
      %889 = vst.msk [vmem:[%s199 + $0x88] sm:$0xff] %vm871, %v824
      %890 = vst.msk [vmem:[%s199 + $0x90] sm:$0xff] %vm871, %v825
      %891 = vst.msk [vmem:[%s199 + $0x98] sm:$0xff] %vm871, %v826
      %892 = vst.msk [vmem:[%s199 + $0xa0] sm:$0xff] %vm871, %v827
      %893 = vst.msk [vmem:[%s199 + $0xa8] sm:$0xff] %vm871, %v828
      %894 = vst.msk [vmem:[%s199 + $0xb0] sm:$0xff] %vm871, %v829
      %895 = vst.msk [vmem:[%s199 + $0xb8] sm:$0xff] %vm871, %v830
      %896 = vst.msk [vmem:[%s199 + $0xc0] sm:$0xff] %vm871, %v831
      %897 = vst.msk [vmem:[%s199 + $0xc8] sm:$0xff] %vm871, %v832
      %898 = vst.msk [vmem:[%s199 + $0xd0] sm:$0xff] %vm871, %v833
      %899 = vst.msk [vmem:[%s199 + $0xd8] sm:$0xff] %vm871, %v834
      %900 = vst.msk [vmem:[%s199 + $0xe0] sm:$0xff] %vm871, %v835
      %901 = vst.msk [vmem:[%s199 + $0xe8] sm:$0xff] %vm871, %v836
      %902 = vst.msk [vmem:[%s199 + $0xf0] sm:$0xff] %vm871, %v837
      %903 = vst.msk [vmem:[%s199 + $0xf8] sm:$0xff] %vm871, %v838
      %904 = vst.msk [vmem:[%s199 + $0x100] sm:$0xff] %vm871, %v839
      %905 = vst.msk [vmem:[%s199 + $0x108] sm:$0xff] %vm871, %v840
      %906 = vst.msk [vmem:[%s199 + $0x110] sm:$0xff] %vm871, %v841
      %907 = vst.msk [vmem:[%s199 + $0x118] sm:$0xff] %vm871, %v842
      %908 = vst.msk [vmem:[%s199 + $0x120] sm:$0xff] %vm871, %v843
      %909 = vst.msk [vmem:[%s199 + $0x128] sm:$0xff] %vm871, %v844
      %910 = vst.msk [vmem:[%s199 + $0x130] sm:$0xff] %vm871, %v845
      %911 = vst.msk [vmem:[%s199 + $0x138] sm:$0xff] %vm871, %v846
      %912 = vst.msk [vmem:[%s199 + $0x140] sm:$0xff] %vm871, %v847
      %913 = vst.msk [vmem:[%s199 + $0x148] sm:$0xff] %vm871, %v848
      %914 = vst.msk [vmem:[%s199 + $0x150] sm:$0xff] %vm871, %v849
      %915 = vst.msk [vmem:[%s199 + $0x158] sm:$0xff] %vm871, %v850
      %916 = vst.msk [vmem:[%s199 + $0x160] sm:$0xff] %vm871, %v851
      %917 = vst.msk [vmem:[%s199 + $0x168] sm:$0xff] %vm871, %v852
      %918 = vst.msk [vmem:[%s199 + $0x170] sm:$0xff] %vm871, %v853
      %919 = vst.msk [vmem:[%s199 + $0x178] sm:$0xff] %vm871, %v854
      %920 = vst.msk [vmem:[%s199 + $0x180] sm:$0xff] %vm871, %v855
      %921 = vst.msk [vmem:[%s199 + $0x188] sm:$0xff] %vm871, %v856
      %922 = vst.msk [vmem:[%s199 + $0x190] sm:$0xff] %vm871, %v857
      %923 = vst.msk [vmem:[%s199 + $0x198] sm:$0xff] %vm871, %v858
      %924 = vst.msk [vmem:[%s199 + $0x1a0] sm:$0xff] %vm871, %v859
      %925 = vst.msk [vmem:[%s199 + $0x1a8] sm:$0xff] %vm871, %v860
      %926 = vst.msk [vmem:[%s199 + $0x1b0] sm:$0xff] %vm871, %v861
      %927 = vst.msk [vmem:[%s199 + $0x1b8] sm:$0xff] %vm871, %v862
      %928 = vst.msk [vmem:[%s199 + $0x1c0] sm:$0xff] %vm871, %v863
      %929 = vst.msk [vmem:[%s199 + $0x1c8] sm:$0xff] %vm871, %v864
      %930 = vst.msk [vmem:[%s199 + $0x1d0] sm:$0xff] %vm871, %v865
      %931 = vst.msk [vmem:[%s199 + $0x1d8] sm:$0xff] %vm871, %v866
      %932 = vst.msk [vmem:[%s199 + $0x1e0] sm:$0xff] %vm871, %v867
      %933 = vst.msk [vmem:[%s199 + $0x1e8] sm:$0xff] %vm871, %v868
      %934 = vst.msk [vmem:[%s199 + $0x1f0] sm:$0xff] %vm871, %v869
      %935 = vst.msk [vmem:[%s199 + $0x1f8] sm:$0xff] %vm871, %v870
      %s936 = smul.u32 64, %s15
      %p937 = scmp.lt.s32.totalorder %s936, 191
      %s938 = scalar_select %p937, %s936, 191
      %s939 = smul.addr %s938, 8
      %s940 = scalar_lea.vmem %s4, %s939
      // Predicated region
      $region37: #{net_forward.3} parent=35 // pred_check
        %p941 = pneg %p122
      $region38: #{net_forward.3} parent=35 // pred_check_branch
        %943 = sbr.rel (%p941) target = $region40
      $region39: #{net_forward.3} parent=35 // pred_region
        %s944 = smul.u32 64, %s15
      $region40: #{net_forward.3} parent=35 // pred_fallthru
        _
    $region36: #{net_forward.3} parent=5 // pred_fallthru
      _
    %p945 = scmp.le.s32.totalorder 2, %s10
    // Predicated region
    $region41: #{net_forward.3} parent=5 // pred_check
      %p946 = pneg %p945
    $region42: #{net_forward.3} parent=5 // pred_check_branch
      %948 = sbr.rel (%p946) target = $region44
    $region43: #{net_forward.3} parent=5 // pred_region
      %s949 = ssub.s32 %s10, 2
      // Predicated region
      $region45: #{net_forward.3} parent=43 // pred_check
        %p950 = pneg %p128
      $region46: #{net_forward.3} parent=43 // pred_check_branch
        %952 = sbr.rel (%p950) target = $region48
      $region47: #{net_forward.3} parent=43 // pred_region
        %s953 = smul.u32 64, %s16
        %p954 = scmp.lt.s32.totalorder %s953, 191
        %s955 = scalar_select %p954, %s953, 191
        %s956 = smul.addr %s955, 8
        %s957 = scalar_lea.vmem %s4, %s956
      $region48: #{net_forward.3} parent=43 // pred_fallthru
        _
    $region44: #{net_forward.3} parent=5 // pred_fallthru
      _
  $region6: #{net_forward.3} parent=0 // loop_footer
    %s14 = sadd.s32 1, %s10
  $region7: #{net_forward.3} parent=0 // loop_footer_branch
    %9 = sbr.rel target = $region3
  $region8: #{net_forward.3} parent=0 // loop_exit
    _

// kernel: net_forward.4
$region0: #{net_forward.4}
  #allocation0 [shape = 'u32[]', space=smem, size = 0x4, offset = 0x4, fixed_abs, tag = 'smem constant byte address 0x4 - core index']
  #allocation1 [shape = 'u32[72,128]{1,0:T(1,128)}', space=vmem, size = 0x9000, scoped, tag = 'internal scratch']
  %s0 = inlined_call_operand.vmem [shape: f32[128,160], index: 0, kind: input, shape index: {}]
  %s1 = inlined_call_operand.vmem [shape: f32[160,128], index: 1, kind: input, shape index: {}]
  %s2 = inlined_call_operand.vmem [shape: f32[1,128], index: 2, kind: input, shape index: {}]
  %s3 = inlined_call_operand.vmem [shape: f32[1,128], index: 3, kind: input, shape index: {}]
  %s4 = inlined_call_operand.vmem [shape: f32[128,16], index: 4, kind: output, shape index: {}]
  %s5 = sld [smem:[#allocation0]]
  $region26: #{net_forward.4} parent=0
    _
  %s7 = ssub.s32 1, %s5
  %s8 = scalar_select 0, %s7, %s5
  // Predicated region
  $region2: #{net_forward.4} parent=0 // pred_check
    _
  $region3: #{net_forward.4} parent=0 // pred_check_branch
    %10 = sbr.rel (0) target = $region5
  $region4: #{net_forward.4} parent=0 // pred_region
    _
  $region5: #{net_forward.4} parent=0 // pred_fallthru
    _
  // Predicated region
  $region6: #{net_forward.4} parent=0 // pred_check
    _
  $region7: #{net_forward.4} parent=0 // pred_check_branch
    %12 = sbr.rel (0) target = $region9
  $region8: #{net_forward.4} parent=0 // pred_region
    _
  $region9: #{net_forward.4} parent=0 // pred_fallthru
    _
  // Predicated region
  $region10: #{net_forward.4} parent=0 // pred_check
    _
  $region11: #{net_forward.4} parent=0 // pred_check_branch
    %14 = sbr.rel (0) target = $region13
  $region12: #{net_forward.4} parent=0 // pred_region
    _
  $region13: #{net_forward.4} parent=0 // pred_fallthru
    _
  // Predicated region
  $region14: #{net_forward.4} parent=0 // pred_check
    _
  $region15: #{net_forward.4} parent=0 // pred_check_branch
    %16 = sbr.rel (0) target = $region17
  $region16: #{net_forward.4} parent=0 // pred_region
    _
  $region17: #{net_forward.4} parent=0 // pred_fallthru
    _
  %v17 = vld [vmem:[%s0] sm:$0xff]
  %v18 = vld [vmem:[%s0 + $0x8] sm:$0xff]
  %v19 = vld [vmem:[%s0 + $0x10] sm:$0xff]
  %v20 = vld [vmem:[%s0 + $0x18] sm:$0xff]
  %v21 = vld [vmem:[%s0 + $0x20] sm:$0xff]
  %v22 = vld [vmem:[%s0 + $0x28] sm:$0xff]
  %v23 = vld [vmem:[%s0 + $0x30] sm:$0xff]
  %v24 = vld [vmem:[%s0 + $0x38] sm:$0xff]
  %v25 = vld [vmem:[%s0 + $0x40] sm:$0xff]
  %v26 = vld [vmem:[%s0 + $0x48] sm:$0xff]
  %v27 = vld [vmem:[%s0 + $0x50] sm:$0xff]
  %v28 = vld [vmem:[%s0 + $0x58] sm:$0xff]
  %v29 = vld [vmem:[%s0 + $0x60] sm:$0xff]
  %v30 = vld [vmem:[%s0 + $0x68] sm:$0xff]
  %v31 = vld [vmem:[%s0 + $0x70] sm:$0xff]
  %v32 = vld [vmem:[%s0 + $0x78] sm:$0xff]
  %v33 = vld [vmem:[%s0 + $0x80] sm:$0xff]
  %v34 = vld [vmem:[%s0 + $0x88] sm:$0xff]
  %v35 = vld [vmem:[%s0 + $0x90] sm:$0xff]
  %v36 = vld [vmem:[%s0 + $0x98] sm:$0xff]
  %v37 = vld [vmem:[%s0 + $0xa0] sm:$0xff]
  %v38 = vld [vmem:[%s0 + $0xa8] sm:$0xff]
  %v39 = vld [vmem:[%s0 + $0xb0] sm:$0xff]
  %v40 = vld [vmem:[%s0 + $0xb8] sm:$0xff]
  %v41 = vld [vmem:[%s0 + $0xc0] sm:$0xff]
  %v42 = vld [vmem:[%s0 + $0xc8] sm:$0xff]
  %v43 = vld [vmem:[%s0 + $0xd0] sm:$0xff]
  %v44 = vld [vmem:[%s0 + $0xd8] sm:$0xff]
  %v45 = vld [vmem:[%s0 + $0xe0] sm:$0xff]
  %v46 = vld [vmem:[%s0 + $0xe8] sm:$0xff]
  %v47 = vld [vmem:[%s0 + $0xf0] sm:$0xff]
  %v48 = vld [vmem:[%s0 + $0xf8] sm:$0xff]
  %v49 = vld [vmem:[%s1] sm:$0xff]
  %v50 = vld [vmem:[%s1 + $0x8] sm:$0xff]
  %v51 = vld [vmem:[%s1 + $0x10] sm:$0xff]
  %v52 = vld [vmem:[%s1 + $0x18] sm:$0xff]
  %v53 = vld [vmem:[%s1 + $0x20] sm:$0xff]
  %v54 = vld [vmem:[%s1 + $0x28] sm:$0xff]
  %v55 = vld [vmem:[%s1 + $0x30] sm:$0xff]
  %v56 = vld [vmem:[%s1 + $0x38] sm:$0xff]
  %v57 = vld [vmem:[%s1 + $0x40] sm:$0xff]
  %v58 = vld [vmem:[%s1 + $0x48] sm:$0xff]
  %v59 = vld [vmem:[%s1 + $0x50] sm:$0xff]
  %v60 = vld [vmem:[%s1 + $0x58] sm:$0xff]
  %v61 = vld [vmem:[%s1 + $0x60] sm:$0xff]
  %v62 = vld [vmem:[%s1 + $0x68] sm:$0xff]
  %v63 = vld [vmem:[%s1 + $0x70] sm:$0xff]
  %v64 = vld [vmem:[%s1 + $0x78] sm:$0xff]
  %v65 = vld [vmem:[%s1 + $0x80] sm:$0xff]
  %v66 = vld [vmem:[%s1 + $0x88] sm:$0xff]
  %v67 = vld [vmem:[%s1 + $0x90] sm:$0xff]
  %v68 = vld [vmem:[%s1 + $0x98] sm:$0xff]
  %vm69 = vcmask 261120
  %v71 = vsel %vm69, %v18, 0
  %v74 = vsel %vm69, %v20, 0
  %v77 = vsel %vm69, %v22, 0
  %v80 = vsel %vm69, %v24, 0
  %v83 = vsel %vm69, %v26, 0
  %v86 = vsel %vm69, %v28, 0
  %v89 = vsel %vm69, %v30, 0
  %v92 = vsel %vm69, %v32, 0
  %v95 = vsel %vm69, %v34, 0
  %v98 = vsel %vm69, %v36, 0
  %v101 = vsel %vm69, %v38, 0
  %v104 = vsel %vm69, %v40, 0
  %v107 = vsel %vm69, %v42, 0
  %v110 = vsel %vm69, %v44, 0
  %v113 = vsel %vm69, %v46, 0
  %v116 = vsel %vm69, %v48, 0
  %118 = vmatpush.msra.mxu0 %v64
  %119 = vmatpush.msra.mxu0 %v63
  %120 = vmatpush.msra.mxu0 %v62
  %121 = vmatpush.msra.mxu0 %v61
  %122 = vmatpush.msra.mxu0 %v60
  %123 = vmatpush.msra.mxu0 %v59
  %124 = vmatpush.msra.mxu0 %v58
  %125 = vmatpush.msra.mxu0 %v57
  %126 = vmatpush.msra.mxu0 %v56
  %127 = vmatpush.msra.mxu0 %v55
  %128 = vmatpush.msra.mxu0 %v54
  %129 = vmatpush.msra.mxu0 %v53
  %130 = vmatpush.msra.mxu0 %v52
  %131 = vmatpush.msra.mxu0 %v51
  %132 = vmatpush.msra.mxu0 %v50
  %133 = vmatpush.msra.mxu0 %v49
  %134 = vmatmul.f32.gmra.mxu0 %v17
  %v135 = vpop.f32.mrf.mxu0
  %v136 = vadd.f32 0.0, %v135
  %137 = vmatmul.f32.gmra.mxu0 %v19
  %v138 = vpop.f32.mrf.mxu0
  %v139 = vadd.f32 0.0, %v138
  %140 = vmatmul.f32.gmra.mxu0 %v21
  %v141 = vpop.f32.mrf.mxu0
  %v142 = vadd.f32 0.0, %v141
  %143 = vmatmul.f32.gmra.mxu0 %v23
  %v144 = vpop.f32.mrf.mxu0
  %v145 = vadd.f32 0.0, %v144
  %146 = vmatmul.f32.gmra.mxu0 %v25
  %v147 = vpop.f32.mrf.mxu0
  %v148 = vadd.f32 0.0, %v147
  %149 = vmatmul.f32.gmra.mxu0 %v27
  %v150 = vpop.f32.mrf.mxu0
  %v151 = vadd.f32 0.0, %v150
  %152 = vmatmul.f32.gmra.mxu0 %v29
  %v153 = vpop.f32.mrf.mxu0
  %v154 = vadd.f32 0.0, %v153
  %155 = vmatmul.f32.gmra.mxu0 %v31
  %v156 = vpop.f32.mrf.mxu0
  %v157 = vadd.f32 0.0, %v156
  %158 = vmatmul.f32.gmra.mxu0 %v33
  %v159 = vpop.f32.mrf.mxu0
  %v160 = vadd.f32 0.0, %v159
  %161 = vmatmul.f32.gmra.mxu0 %v35
  %v162 = vpop.f32.mrf.mxu0
  %v163 = vadd.f32 0.0, %v162
  %164 = vmatmul.f32.gmra.mxu0 %v37
  %v165 = vpop.f32.mrf.mxu0
  %v166 = vadd.f32 0.0, %v165
  %167 = vmatmul.f32.gmra.mxu0 %v39
  %v168 = vpop.f32.mrf.mxu0
  %v169 = vadd.f32 0.0, %v168
  %170 = vmatmul.f32.gmra.mxu0 %v41
  %v171 = vpop.f32.mrf.mxu0
  %v172 = vadd.f32 0.0, %v171
  %173 = vmatmul.f32.gmra.mxu0 %v43
  %v174 = vpop.f32.mrf.mxu0
  %v175 = vadd.f32 0.0, %v174
  %176 = vmatmul.f32.gmra.mxu0 %v45
  %v177 = vpop.f32.mrf.mxu0
  %v178 = vadd.f32 0.0, %v177
  %179 = vmatmul.f32.gmra.mxu0 %v47
  %v180 = vpop.f32.mrf.mxu0
  %v181 = vadd.f32 0.0, %v180
  %182 = vdwg.mxu0
  %183 = vmatpush.msra.mxu0 0.0
  %184 = vmatpush.msra.mxu0 0.0
  %185 = vmatpush.msra.mxu0 0.0
  %186 = vmatpush.msra.mxu0 0.0
  %187 = vmatpush.msra.mxu0 0.0
  %188 = vmatpush.msra.mxu0 0.0
  %189 = vmatpush.msra.mxu0 0.0
  %190 = vmatpush.msra.mxu0 0.0
  %191 = vmatpush.msra.mxu0 0.0
  %192 = vmatpush.msra.mxu0 0.0
  %193 = vmatpush.msra.mxu0 0.0
  %194 = vmatpush.msra.mxu0 0.0
  %195 = vmatpush.msra.mxu0 %v68
  %196 = vmatpush.msra.mxu0 %v67
  %197 = vmatpush.msra.mxu0 %v66
  %198 = vmatpush.msra.mxu0 %v65
  %199 = vmatmul.f32.gmra.mxu0 %v71
  %v200 = vpop.f32.mrf.mxu0
  %v201 = vadd.f32 %v136, %v200
  %202 = vmatmul.f32.gmra.mxu0 %v74
  %v203 = vpop.f32.mrf.mxu0
  %v204 = vadd.f32 %v139, %v203
  %205 = vmatmul.f32.gmra.mxu0 %v77
  %v206 = vpop.f32.mrf.mxu0
  %v207 = vadd.f32 %v142, %v206
  %208 = vmatmul.f32.gmra.mxu0 %v80
  %v209 = vpop.f32.mrf.mxu0
  %v210 = vadd.f32 %v145, %v209
  %211 = vmatmul.f32.gmra.mxu0 %v83
  %v212 = vpop.f32.mrf.mxu0
  %v213 = vadd.f32 %v148, %v212
  %214 = vmatmul.f32.gmra.mxu0 %v86
  %v215 = vpop.f32.mrf.mxu0
  %v216 = vadd.f32 %v151, %v215
  %217 = vmatmul.f32.gmra.mxu0 %v89
  %v218 = vpop.f32.mrf.mxu0
  %v219 = vadd.f32 %v154, %v218
  %220 = vmatmul.f32.gmra.mxu0 %v92
  %v221 = vpop.f32.mrf.mxu0
  %v222 = vadd.f32 %v157, %v221
  %223 = vmatmul.f32.gmra.mxu0 %v95
  %v224 = vpop.f32.mrf.mxu0
  %v225 = vadd.f32 %v160, %v224
  %226 = vmatmul.f32.gmra.mxu0 %v98
  %v227 = vpop.f32.mrf.mxu0
  %v228 = vadd.f32 %v163, %v227
  %229 = vmatmul.f32.gmra.mxu0 %v101
  %v230 = vpop.f32.mrf.mxu0
  %v231 = vadd.f32 %v166, %v230
  %232 = vmatmul.f32.gmra.mxu0 %v104
  %v233 = vpop.f32.mrf.mxu0
  %v234 = vadd.f32 %v169, %v233
  %235 = vmatmul.f32.gmra.mxu0 %v107
  %v236 = vpop.f32.mrf.mxu0
  %v237 = vadd.f32 %v172, %v236
  %238 = vmatmul.f32.gmra.mxu0 %v110
  %v239 = vpop.f32.mrf.mxu0
  %v240 = vadd.f32 %v175, %v239
  %241 = vmatmul.f32.gmra.mxu0 %v113
  %v242 = vpop.f32.mrf.mxu0
  %v243 = vadd.f32 %v178, %v242
  %244 = vmatmul.f32.gmra.mxu0 %v116
  %v245 = vpop.f32.mrf.mxu0
  %v246 = vadd.f32 %v181, %v245
  %247 = vdwg.mxu0
  %v248 = vld [vmem:[%s2] sm:$0x1]
  %v250 = vperm.slane %v248, 0
  %v252 = vmul.f32 %v201, %v250
  %v253 = vmul.f32 %v204, %v250
  %v254 = vmul.f32 %v207, %v250
  %v255 = vmul.f32 %v210, %v250
  %v256 = vmul.f32 %v213, %v250
  %v257 = vmul.f32 %v216, %v250
  %v258 = vmul.f32 %v219, %v250
  %v259 = vmul.f32 %v222, %v250
  %v260 = vmul.f32 %v225, %v250
  %v261 = vmul.f32 %v228, %v250
  %v262 = vmul.f32 %v231, %v250
  %v263 = vmul.f32 %v234, %v250
  %v264 = vmul.f32 %v237, %v250
  %v265 = vmul.f32 %v240, %v250
  %v266 = vmul.f32 %v243, %v250
  %v267 = vmul.f32 %v246, %v250
  %v268 = vld [vmem:[%s3] sm:$0x1]
  %v270 = vperm.slane %v268, 0
  %v272 = vadd.f32 %v252, %v270
  %v273 = vadd.f32 %v253, %v270
  %v274 = vadd.f32 %v254, %v270
  %v275 = vadd.f32 %v255, %v270
  %v276 = vadd.f32 %v256, %v270
  %v277 = vadd.f32 %v257, %v270
  %v278 = vadd.f32 %v258, %v270
  %v279 = vadd.f32 %v259, %v270
  %v280 = vadd.f32 %v260, %v270
  %v281 = vadd.f32 %v261, %v270
  %v282 = vadd.f32 %v262, %v270
  %v283 = vadd.f32 %v263, %v270
  %v284 = vadd.f32 %v264, %v270
  %v285 = vadd.f32 %v265, %v270
  %v286 = vadd.f32 %v266, %v270
  %v287 = vadd.f32 %v267, %v270
  %v288 = vmax.f32 %v272, 0.0
  %v289 = vmax.f32 %v273, 0.0
  %v290 = vmax.f32 %v274, 0.0
  %v291 = vmax.f32 %v275, 0.0
  %v292 = vmax.f32 %v276, 0.0
  %v293 = vmax.f32 %v277, 0.0
  %v294 = vmax.f32 %v278, 0.0
  %v295 = vmax.f32 %v279, 0.0
  %v296 = vmax.f32 %v280, 0.0
  %v297 = vmax.f32 %v281, 0.0
  %v298 = vmax.f32 %v282, 0.0
  %v299 = vmax.f32 %v283, 0.0
  %v300 = vmax.f32 %v284, 0.0
  %v301 = vmax.f32 %v285, 0.0
  %v302 = vmax.f32 %v286, 0.0
  %v303 = vmax.f32 %v287, 0.0
  %vm304 = vcmask 130048
  %305 = vst.msk [vmem:[%s4] sm:$0xff] %vm304, %v288
  %306 = vst.msk [vmem:[%s4 + $0x8] sm:$0xff] %vm304, %v289
  %307 = vst.msk [vmem:[%s4 + $0x10] sm:$0xff] %vm304, %v290
  %308 = vst.msk [vmem:[%s4 + $0x18] sm:$0xff] %vm304, %v291
  %309 = vst.msk [vmem:[%s4 + $0x20] sm:$0xff] %vm304, %v292
  %310 = vst.msk [vmem:[%s4 + $0x28] sm:$0xff] %vm304, %v293
  %311 = vst.msk [vmem:[%s4 + $0x30] sm:$0xff] %vm304, %v294
  %312 = vst.msk [vmem:[%s4 + $0x38] sm:$0xff] %vm304, %v295
  %313 = vst.msk [vmem:[%s4 + $0x40] sm:$0xff] %vm304, %v296
  %314 = vst.msk [vmem:[%s4 + $0x48] sm:$0xff] %vm304, %v297
  %315 = vst.msk [vmem:[%s4 + $0x50] sm:$0xff] %vm304, %v298
  %316 = vst.msk [vmem:[%s4 + $0x58] sm:$0xff] %vm304, %v299
  %317 = vst.msk [vmem:[%s4 + $0x60] sm:$0xff] %vm304, %v300
  %318 = vst.msk [vmem:[%s4 + $0x68] sm:$0xff] %vm304, %v301
  %319 = vst.msk [vmem:[%s4 + $0x70] sm:$0xff] %vm304, %v302
  %320 = vst.msk [vmem:[%s4 + $0x78] sm:$0xff] %vm304, %v303
  // Predicated region
  $region18: #{net_forward.4} parent=0 // pred_check
    _
  $region19: #{net_forward.4} parent=0 // pred_check_branch
    %322 = sbr.rel (0) target = $region21
  $region20: #{net_forward.4} parent=0 // pred_region
    _
  $region21: #{net_forward.4} parent=0 // pred_fallthru
    _
  // Predicated region
  $region22: #{net_forward.4} parent=0 // pred_check
    _
  $region23: #{net_forward.4} parent=0 // pred_check_branch
    %324 = sbr.rel (0) target = $region25
  $region24: #{net_forward.4} parent=0 // pred_region
    _
  $region25: #{net_forward.4} parent=0 // pred_fallthru
    _

// kernel: net_forward.5
$region0: #{net_forward.5}
  #allocation0 [shape = 'u32[]', space=smem, size = 0x4, offset = 0x4, fixed_abs, tag = 'smem constant byte address 0x4 - core index']
  #allocation1 [shape = 'u32[72,128]{1,0:T(1,128)}', space=vmem, size = 0x9000, scoped, tag = 'internal scratch']
  %s0 = inlined_call_operand.vmem [shape: f32[8,256], index: 0, kind: input, shape index: {}]
  %s1 = inlined_call_operand.vmem [shape: f32[256,128], index: 1, kind: input, shape index: {}]
  %s2 = inlined_call_operand.vmem [shape: f32[1,128], index: 2, kind: input, shape index: {}]
  %s3 = inlined_call_operand.vmem [shape: f32[1,128], index: 3, kind: input, shape index: {}]
  %s4 = inlined_call_operand.vmem [shape: f32[128,128], index: 4, kind: input, shape index: {}]
  %s5 = inlined_call_operand.vmem [shape: f32[1,128], index: 5, kind: input, shape index: {}]
  %s6 = inlined_call_operand.vmem [shape: f32[1,128], index: 6, kind: input, shape index: {}]
  %s7 = inlined_call_operand.vmem [shape: f32[128,128], index: 7, kind: input, shape index: {}]
  %s8 = inlined_call_operand.vmem [shape: f32[1,128], index: 8, kind: input, shape index: {}]
  %s9 = inlined_call_operand.vmem [shape: f32[8,128], index: 9, kind: output, shape index: {}]
  %s10 = sld [smem:[#allocation0]]
  $region46: #{net_forward.5} parent=0
    _
  %s12 = ssub.s32 1, %s10
  %s13 = scalar_select 0, %s12, %s10
  // Predicated region
  $region2: #{net_forward.5} parent=0 // pred_check
    _
  $region3: #{net_forward.5} parent=0 // pred_check_branch
    %15 = sbr.rel (0) target = $region5
  $region4: #{net_forward.5} parent=0 // pred_region
    _
  $region5: #{net_forward.5} parent=0 // pred_fallthru
    _
  // Predicated region
  $region6: #{net_forward.5} parent=0 // pred_check
    _
  $region7: #{net_forward.5} parent=0 // pred_check_branch
    %17 = sbr.rel (0) target = $region9
  $region8: #{net_forward.5} parent=0 // pred_region
    _
  $region9: #{net_forward.5} parent=0 // pred_fallthru
    _
  // Predicated region
  $region10: #{net_forward.5} parent=0 // pred_check
    _
  $region11: #{net_forward.5} parent=0 // pred_check_branch
    %19 = sbr.rel (0) target = $region13
  $region12: #{net_forward.5} parent=0 // pred_region
    _
  $region13: #{net_forward.5} parent=0 // pred_fallthru
    _
  // Predicated region
  $region14: #{net_forward.5} parent=0 // pred_check
    _
  $region15: #{net_forward.5} parent=0 // pred_check_branch
    %21 = sbr.rel (0) target = $region17
  $region16: #{net_forward.5} parent=0 // pred_region
    _
  $region17: #{net_forward.5} parent=0 // pred_fallthru
    _
  // Predicated region
  $region18: #{net_forward.5} parent=0 // pred_check
    _
  $region19: #{net_forward.5} parent=0 // pred_check_branch
    %23 = sbr.rel (0) target = $region21
  $region20: #{net_forward.5} parent=0 // pred_region
    _
  $region21: #{net_forward.5} parent=0 // pred_fallthru
    _
  // Predicated region
  $region22: #{net_forward.5} parent=0 // pred_check
    _
  $region23: #{net_forward.5} parent=0 // pred_check_branch
    %25 = sbr.rel (0) target = $region25
  $region24: #{net_forward.5} parent=0 // pred_region
    _
  $region25: #{net_forward.5} parent=0 // pred_fallthru
    _
  // Predicated region
  $region26: #{net_forward.5} parent=0 // pred_check
    _
  $region27: #{net_forward.5} parent=0 // pred_check_branch
    %27 = sbr.rel (0) target = $region29
  $region28: #{net_forward.5} parent=0 // pred_region
    _
  $region29: #{net_forward.5} parent=0 // pred_fallthru
    _
  // Predicated region
  $region30: #{net_forward.5} parent=0 // pred_check
    _
  $region31: #{net_forward.5} parent=0 // pred_check_branch
    %29 = sbr.rel (0) target = $region33
  $region32: #{net_forward.5} parent=0 // pred_region
    _
  $region33: #{net_forward.5} parent=0 // pred_fallthru
    _
  // Predicated region
  $region34: #{net_forward.5} parent=0 // pred_check
    _
  $region35: #{net_forward.5} parent=0 // pred_check_branch
    %31 = sbr.rel (0) target = $region37
  $region36: #{net_forward.5} parent=0 // pred_region
    _
  $region37: #{net_forward.5} parent=0 // pred_fallthru
    _
  %v32 = vld [vmem:[%s0] sm:$0xff]
  %v33 = vld [vmem:[%s0 + $0x8] sm:$0xff]
  %v34 = vld [vmem:[%s1] sm:$0xff]
  %v35 = vld [vmem:[%s1 + $0x8] sm:$0xff]
  %v36 = vld [vmem:[%s1 + $0x10] sm:$0xff]
  %v37 = vld [vmem:[%s1 + $0x18] sm:$0xff]
  %v38 = vld [vmem:[%s1 + $0x20] sm:$0xff]
  %v39 = vld [vmem:[%s1 + $0x28] sm:$0xff]
  %v40 = vld [vmem:[%s1 + $0x30] sm:$0xff]
  %v41 = vld [vmem:[%s1 + $0x38] sm:$0xff]
  %v42 = vld [vmem:[%s1 + $0x40] sm:$0xff]
  %v43 = vld [vmem:[%s1 + $0x48] sm:$0xff]
  %v44 = vld [vmem:[%s1 + $0x50] sm:$0xff]
  %v45 = vld [vmem:[%s1 + $0x58] sm:$0xff]
  %v46 = vld [vmem:[%s1 + $0x60] sm:$0xff]
  %v47 = vld [vmem:[%s1 + $0x68] sm:$0xff]
  %v48 = vld [vmem:[%s1 + $0x70] sm:$0xff]
  %v49 = vld [vmem:[%s1 + $0x78] sm:$0xff]
  %v50 = vld [vmem:[%s1 + $0x80] sm:$0xff]
  %v51 = vld [vmem:[%s1 + $0x88] sm:$0xff]
  %v52 = vld [vmem:[%s1 + $0x90] sm:$0xff]
  %v53 = vld [vmem:[%s1 + $0x98] sm:$0xff]
  %v54 = vld [vmem:[%s1 + $0xa0] sm:$0xff]
  %v55 = vld [vmem:[%s1 + $0xa8] sm:$0xff]
  %v56 = vld [vmem:[%s1 + $0xb0] sm:$0xff]
  %v57 = vld [vmem:[%s1 + $0xb8] sm:$0xff]
  %v58 = vld [vmem:[%s1 + $0xc0] sm:$0xff]
  %v59 = vld [vmem:[%s1 + $0xc8] sm:$0xff]
  %v60 = vld [vmem:[%s1 + $0xd0] sm:$0xff]
  %v61 = vld [vmem:[%s1 + $0xd8] sm:$0xff]
  %v62 = vld [vmem:[%s1 + $0xe0] sm:$0xff]
  %v63 = vld [vmem:[%s1 + $0xe8] sm:$0xff]
  %v64 = vld [vmem:[%s1 + $0xf0] sm:$0xff]
  %v65 = vld [vmem:[%s1 + $0xf8] sm:$0xff]
  %66 = vmatpush.msra.mxu0 %v49
  %67 = vmatpush.msra.mxu0 %v48
  %68 = vmatpush.msra.mxu0 %v47
  %69 = vmatpush.msra.mxu0 %v46
  %70 = vmatpush.msra.mxu0 %v45
  %71 = vmatpush.msra.mxu0 %v44
  %72 = vmatpush.msra.mxu0 %v43
  %73 = vmatpush.msra.mxu0 %v42
  %74 = vmatpush.msra.mxu0 %v41
  %75 = vmatpush.msra.mxu0 %v40
  %76 = vmatpush.msra.mxu0 %v39
  %77 = vmatpush.msra.mxu0 %v38
  %78 = vmatpush.msra.mxu0 %v37
  %79 = vmatpush.msra.mxu0 %v36
  %80 = vmatpush.msra.mxu0 %v35
  %81 = vmatpush.msra.mxu0 %v34
  %82 = vmatmul.f32.gmra.mxu0 %v32
  %v83 = vpop.f32.mrf.mxu0
  %v84 = vadd.f32 0.0, %v83
  %85 = vdwg.mxu0
  %86 = vmatpush.msra.mxu0 %v65
  %87 = vmatpush.msra.mxu0 %v64
  %88 = vmatpush.msra.mxu0 %v63
  %89 = vmatpush.msra.mxu0 %v62
  %90 = vmatpush.msra.mxu0 %v61
  %91 = vmatpush.msra.mxu0 %v60
  %92 = vmatpush.msra.mxu0 %v59
  %93 = vmatpush.msra.mxu0 %v58
  %94 = vmatpush.msra.mxu0 %v57
  %95 = vmatpush.msra.mxu0 %v56
  %96 = vmatpush.msra.mxu0 %v55
  %97 = vmatpush.msra.mxu0 %v54
  %98 = vmatpush.msra.mxu0 %v53
  %99 = vmatpush.msra.mxu0 %v52
  %100 = vmatpush.msra.mxu0 %v51
  %101 = vmatpush.msra.mxu0 %v50
  %102 = vmatmul.f32.gmra.mxu0 %v33
  %v103 = vpop.f32.mrf.mxu0
  %v104 = vadd.f32 %v84, %v103
  %105 = vdwg.mxu0
  %v106 = vld [vmem:[%s2] sm:$0x1]
  %v108 = vperm.slane %v106, 0
  %v110 = vmul.f32 %v104, %v108
  %v111 = vld [vmem:[%s3] sm:$0x1]
  %v113 = vperm.slane %v111, 0
  %v115 = vadd.f32 %v110, %v113
  %v116 = vmax.f32 %v115, 0.0
  %v117 = vld [vmem:[%s4] sm:$0xff]
  %v118 = vld [vmem:[%s4 + $0x8] sm:$0xff]
  %v119 = vld [vmem:[%s4 + $0x10] sm:$0xff]
  %v120 = vld [vmem:[%s4 + $0x18] sm:$0xff]
  %v121 = vld [vmem:[%s4 + $0x20] sm:$0xff]
  %v122 = vld [vmem:[%s4 + $0x28] sm:$0xff]
  %v123 = vld [vmem:[%s4 + $0x30] sm:$0xff]
  %v124 = vld [vmem:[%s4 + $0x38] sm:$0xff]
  %v125 = vld [vmem:[%s4 + $0x40] sm:$0xff]
  %v126 = vld [vmem:[%s4 + $0x48] sm:$0xff]
  %v127 = vld [vmem:[%s4 + $0x50] sm:$0xff]
  %v128 = vld [vmem:[%s4 + $0x58] sm:$0xff]
  %v129 = vld [vmem:[%s4 + $0x60] sm:$0xff]
  %v130 = vld [vmem:[%s4 + $0x68] sm:$0xff]
  %v131 = vld [vmem:[%s4 + $0x70] sm:$0xff]
  %v132 = vld [vmem:[%s4 + $0x78] sm:$0xff]
  %133 = vmatpush.msra.mxu0 %v132
  %134 = vmatpush.msra.mxu0 %v131
  %135 = vmatpush.msra.mxu0 %v130
  %136 = vmatpush.msra.mxu0 %v129
  %137 = vmatpush.msra.mxu0 %v128
  %138 = vmatpush.msra.mxu0 %v127
  %139 = vmatpush.msra.mxu0 %v126
  %140 = vmatpush.msra.mxu0 %v125
  %141 = vmatpush.msra.mxu0 %v124
  %142 = vmatpush.msra.mxu0 %v123
  %143 = vmatpush.msra.mxu0 %v122
  %144 = vmatpush.msra.mxu0 %v121
  %145 = vmatpush.msra.mxu0 %v120
  %146 = vmatpush.msra.mxu0 %v119
  %147 = vmatpush.msra.mxu0 %v118
  %148 = vmatpush.msra.mxu0 %v117
  %149 = vmatmul.f32.gmra.mxu0 %v116
  %v150 = vpop.f32.mrf.mxu0
  %v151 = vadd.f32 0.0, %v150
  %152 = vdwg.mxu0
  %v153 = vld [vmem:[%s5] sm:$0x1]
  %v155 = vperm.slane %v153, 0
  %v157 = vmul.f32 %v151, %v155
  %v158 = vld [vmem:[%s6] sm:$0x1]
  %v160 = vperm.slane %v158, 0
  %v162 = vadd.f32 %v157, %v160
  %v163 = vmax.f32 %v162, 0.0
  %v164 = vld [vmem:[%s7] sm:$0xff]
  %v165 = vld [vmem:[%s7 + $0x8] sm:$0xff]
  %v166 = vld [vmem:[%s7 + $0x10] sm:$0xff]
  %v167 = vld [vmem:[%s7 + $0x18] sm:$0xff]
  %v168 = vld [vmem:[%s7 + $0x20] sm:$0xff]
  %v169 = vld [vmem:[%s7 + $0x28] sm:$0xff]
  %v170 = vld [vmem:[%s7 + $0x30] sm:$0xff]
  %v171 = vld [vmem:[%s7 + $0x38] sm:$0xff]
  %v172 = vld [vmem:[%s7 + $0x40] sm:$0xff]
  %v173 = vld [vmem:[%s7 + $0x48] sm:$0xff]
  %v174 = vld [vmem:[%s7 + $0x50] sm:$0xff]
  %v175 = vld [vmem:[%s7 + $0x58] sm:$0xff]
  %v176 = vld [vmem:[%s7 + $0x60] sm:$0xff]
  %v177 = vld [vmem:[%s7 + $0x68] sm:$0xff]
  %v178 = vld [vmem:[%s7 + $0x70] sm:$0xff]
  %v179 = vld [vmem:[%s7 + $0x78] sm:$0xff]
  %v180 = vld [vmem:[%s8] sm:$0x1]
  %v182 = vperm.slane %v180, 0
  %184 = vmatpush.msra.mxu0 %v179
  %185 = vmatpush.msra.mxu0 %v178
  %186 = vmatpush.msra.mxu0 %v177
  %187 = vmatpush.msra.mxu0 %v176
  %188 = vmatpush.msra.mxu0 %v175
  %189 = vmatpush.msra.mxu0 %v174
  %190 = vmatpush.msra.mxu0 %v173
  %191 = vmatpush.msra.mxu0 %v172
  %192 = vmatpush.msra.mxu0 %v171
  %193 = vmatpush.msra.mxu0 %v170
  %194 = vmatpush.msra.mxu0 %v169
  %195 = vmatpush.msra.mxu0 %v168
  %196 = vmatpush.msra.mxu0 %v167
  %197 = vmatpush.msra.mxu0 %v166
  %198 = vmatpush.msra.mxu0 %v165
  %199 = vmatpush.msra.mxu0 %v164
  %200 = vmatmul.f32.gmra.mxu0 %v163
  %v201 = vpop.f32.mrf.mxu0
  %v202 = vadd.f32 %v182, %v201
  %203 = vdwg.mxu0
  %204 = vst [vmem:[%s9] sm:$0xff] %v202
  // Predicated region
  $region38: #{net_forward.5} parent=0 // pred_check
    _
  $region39: #{net_forward.5} parent=0 // pred_check_branch
    %206 = sbr.rel (0) target = $region41
  $region40: #{net_forward.5} parent=0 // pred_region
    _
  $region41: #{net_forward.5} parent=0 // pred_fallthru
    _
  // Predicated region
  $region42: #{net_forward.5} parent=0 // pred_check
    _
  $region43: #{net_forward.5} parent=0 // pred_check_branch
    %208 = sbr.rel (0) target = $region45
  $region44: #{net_forward.5} parent=0 // pred_region
    _
  $region45: #{net_forward.5} parent=0 // pred_fallthru
    _

</llo_original>
